<compile_context>
chip_gen: v7x
topology: tpu7x:2x2x1
jax: 0.10.0
libtpu: 0.0.40
codegen_flags: <defaults>
</compile_context>

<pallas_src>
import functools

import jax
import jax.numpy as jnp
import numpy as np
from jax import lax
from jax.experimental import pallas as pl
from jax.experimental.pallas import tpu as pltpu

EPS = 1e-5


def _vmem_limit_bytes():
    # ~3/4 of physical VMEM: ~96 MiB on v5e/v6e (128 MiB), ~48 MiB on v7x (64 MiB).
    try:
        cap = int(pltpu.get_tpu_info().vmem_capacity_bytes)
    except Exception:
        cap = 64 * 1024 * 1024
    return max(32 * 1024 * 1024, min(100 * 1024 * 1024, (3 * cap) // 4))


# ---------------------------------------------------------------------------
# Fused per-block kernel: [conv1+BN+ReLU | skip conv+BN] (one matmul),
# 3x3 conv (one big matmul over staged taps) + BN + ReLU, conv3 + BN,
# SE gate, residual add, final ReLU.  All intermediates stay in VMEM.
# ---------------------------------------------------------------------------
def _block_kernel(x_ref,
                  w1sk_ref, s1sk_ref, b1sk_ref,
                  w2_ref, s2_ref, b2_ref,
                  w3_ref, s3_ref, b3_ref,
                  sew1_ref, seb1_ref, sew2_ref, seb2_ref,
                  o_ref,
                  a1pad_ref, taps_ref,
                  *, H, W, Cb, pad_l, pad_r, compute_dtype):
    HW = H * W
    cd = compute_dtype
    b_blk = x_ref.shape[0]
    inv_hw = 1.0 / HW

    # The pad strips are never dirtied by the interior store, so zeroing them
    # once per grid step is sufficient.  Deliberately NOT gated on
    # pl.program_id(0)==0: under megacore sharding core 1 never sees i==0.
    zl = jnp.zeros((Cb, pad_l), cd)
    zr = jnp.zeros((Cb, pad_r), cd)
    for b in range(b_blk):
        for v in range(3):
            a1pad_ref[b, v, :, pl.ds(0, pad_l)] = zl
            a1pad_ref[b, v, :, pl.ds(pad_l + HW, pad_r)] = zr

    # x-coordinate of every flattened pixel; used once per image to build the
    # two horizontally pre-masked copies of a1 (hoisted out of the 9-tap loop).
    wcol = lax.broadcasted_iota(jnp.int32, (1, HW), 1) % W

    for b in range(b_blk):               # unrolled: images are independent
        x = x_ref[b].astype(cd)          # (Cin, HW); cast in-vregs, not in HBM

        # conv1 (1x1)+BN fused with the skip 1x1 conv+BN: ONE matmul over the
        # shared Cin contraction, rows split afterwards (ReLU only on conv1).
        y0 = jnp.dot(w1sk_ref[...], x, preferred_element_type=jnp.float32)
        y0 = y0 * s1sk_ref[...] + b1sk_ref[...]          # (Cb+Cout, HW) f32
        a1 = jnp.maximum(y0[:Cb], 0.0).astype(cd)        # (Cb, HW)
        skip = y0[Cb:]                                   # (Cout, HW) f32

        # 3x3 / stride 1 / SAME conv as ONE matmul.
        # Horizontal edges: two pre-masked copies (2 selects); vertical edges
        # read the zero pad strips.  Interior stores are lane-aligned (pad_l
        # is a multiple of 128) -> unmasked vst.
        a1_l = jnp.where(wcol == W - 1, 0.0, a1).astype(cd)   # for dx = -1 taps
        a1_r = jnp.where(wcol == 0, 0.0, a1).astype(cd)       # for dx = +1 taps
        a1pad_ref[b, 0, :, pl.ds(pad_l, HW)] = a1
        a1pad_ref[b, 1, :, pl.ds(pad_l, HW)] = a1_l
        a1pad_ref[b, 2, :, pl.ds(pad_l, HW)] = a1_r

        # Stage the 9 shifted taps contiguously: tap k at sublane offset k*Cb.
        k = 0
        for dy in (-1, 0, 1):
            for dx in (-1, 0, 1):
                src = 0 if dx == 0 else (1 if dx == -1 else 2)
                shift = dy * W + dx
                taps_ref[b, pl.ds(k * Cb, Cb), :] = (
                    a1pad_ref[b, src, :, pl.ds(pad_l + shift, HW)])
                k += 1

        # One big matmul: (Cb, 9*Cb) x (9*Cb, HW) -> (Cb, HW), f32 accumulate.
        acc2 = jnp.dot(w2_ref[...], taps_ref[b],
                       preferred_element_type=jnp.float32)
        a2 = jnp.maximum(acc2 * s2_ref[...] + b2_ref[...], 0.0)   # (Cb, HW) f32
        # Dropout: identity (inference mode).

        # conv3 (1x1) + BN (no activation)
        out3 = jnp.dot(w3_ref[...], a2.astype(cd),
                       preferred_element_type=jnp.float32)
        out3 = out3 * s3_ref[...] + b3_ref[...]                   # (Cout, HW) f32

        # Squeeze-Excite gate.  These 1-lane matmuls are a latency item, not a
        # throughput item; with b_blk>1 the independent images' SE chains and
        # epilogues overlap each other.
        pooled = jnp.sum(out3, axis=1, keepdims=True) * inv_hw    # (Cout, 1)
        h = jnp.maximum(
            jnp.dot(sew1_ref[...], pooled, preferred_element_type=jnp.float32)
            + seb1_ref[...], 0.0)                                 # (Cse, 1)
        gate = jax.nn.sigmoid(
            jnp.dot(sew2_ref[...], h, preferred_element_type=jnp.float32)
            + seb2_ref[...])                                      # (Cout, 1)

        # SE scale, residual add, final ReLU -- the only HBM write of the block.
        o_ref[b] = jnp.maximum(out3 * gate + skip, 0.0).astype(o_ref.dtype)


def residual_block_2d(x_nchw, p, *, compute_dtype=jnp.bfloat16,
                      out_dtype=jnp.float32, b_blk=None):
    N, Cin, H, W = x_nchw.shape
    Cb = p["w1"].shape[1]
    Cout = p["w3"].shape[1]
    HW = H * W
    cd = compute_dtype

    if b_blk is None:
        # Keep the grid length >= 2 when possible so both v7x TensorCores get work.
        b_blk = 1 if N <= 2 else 2
    assert N % b_blk == 0, (N, b_blk)

    # NCHW -> (N, Cin, H*W): free reshape.  No host-side astype of x — the
    # cast to the MXU operand dtype happens inside the kernel (in vregs).
    x = x_nchw.reshape(N, Cin, HW)

    def colv(v):  # (1, C) -> (C, 1) f32 column vector (broadcast over lanes)
        return v.reshape(-1, 1).astype(jnp.float32)

    # conv1 and skip share the Cin contraction -> one fused (Cb+Cout, Cin) operand.
    w1sk = jnp.concatenate([p["w1"].T, p["wskip"].T], axis=0).astype(cd)
    s1sk = jnp.concatenate([colv(p["s1"]), colv(p["sskip"])], axis=0)
    b1sk = jnp.concatenate([colv(p["b1"]), colv(p["bskip"])], axis=0)
    # 3x3 conv weights reshaped for the single big matmul: (Cb_out, 9*Cb_in),
    # column block k = (dy_idx*3 + dx_idx) matches the in-kernel tap order.
    w2big = jnp.transpose(p["w2_4d"], (3, 0, 1, 2)).reshape(Cb, 9 * Cb).astype(cd)
    w3t = p["w3"].T.astype(cd)                                    # (Cout, Cb)
    sew1t = p["se_w1"].T.astype(jnp.float32)                      # (Cse, Cout)
    sew2t = p["se_w2"].T.astype(jnp.float32)                      # (Cout, Cse)

    operands = [
        x,
        w1sk, s1sk, b1sk,
        w2big, colv(p["s2"]), colv(p["b2"]),
        w3t, colv(p["s3"]), colv(p["b3"]),
        sew1t, colv(p["se_b1"]), sew2t, colv(p["se_b2"]),
    ]

    def const_spec(a):
        nd = a.ndim
        return pl.BlockSpec(a.shape, lambda i, _nd=nd: (0,) * _nd)

    # Pad sizes: >= W+1 zero lanes each side (vertical taps) and a multiple of
    # 128 so the interior a1 store is a lane-aligned, unmasked vst.
    pad_l = -(-(W + 1) // 128) * 128
    pad_r = pad_l

    in_specs = [pl.BlockSpec((b_blk, Cin, HW), lambda i: (i, 0, 0))]
    in_specs += [const_spec(a) for a in operands[1:]]

    out = pl.pallas_call(
        functools.partial(_block_kernel, H=H, W=W, Cb=Cb,
                          pad_l=pad_l, pad_r=pad_r, compute_dtype=cd),
        out_shape=jax.ShapeDtypeStruct((N, Cout, HW), out_dtype),
        grid_spec=pltpu.PrefetchScalarGridSpec(
            num_scalar_prefetch=0,
            grid=(N // b_blk,),
            in_specs=in_specs,
            out_specs=pl.BlockSpec((b_blk, Cout, HW), lambda i: (i, 0, 0)),
            scratch_shapes=[
                # 3 horizontally pre-masked, zero-padded copies of a1 per image
                pltpu.VMEM((b_blk, 3, Cb, pad_l + HW + pad_r), cd),
                # 9 shifted taps staged contiguously for the single big matmul
                pltpu.VMEM((b_blk, 9 * Cb, HW), cd),
            ],
        ),
        compiler_params=pltpu.CompilerParams(
            dimension_semantics=("parallel",),
            vmem_limit_bytes=_vmem_limit_bytes(),
        ),
    )(*operands)

    # (N, Cout, H*W) -> NCHW: free reshape.
    return out.reshape(N, Cout, H, W)


# ---------------------------------------------------------------------------
# Parameter construction (deterministic, synthetic).  BN folded to scale/bias.
# ---------------------------------------------------------------------------
def _folded_bn(kg, kb, km, kv, c):
    gamma = 1.0 + 0.1 * jax.random.normal(kg, (c,), jnp.float32)
    beta = 0.1 * jax.random.normal(kb, (c,), jnp.float32)
    mean = 0.1 * jax.random.normal(km, (c,), jnp.float32)
    var = 1.0 + 0.1 * jnp.abs(jax.random.normal(kv, (c,), jnp.float32))
    s = gamma / jnp.sqrt(var + EPS)
    b = beta - mean * s
    return s.reshape(1, c), b.reshape(1, c)


def init_params(key, cin, cout):
    cb = cout // 4                      # bottleneck channels (expansion=4)
    cse = max(1, cout // 16)            # SE channels
    k = jax.random.split(key, 24)

    def w(kk, shape, scale=0.1):
        return scale * jax.random.normal(kk, shape, jnp.float32)

    p = {}
    # conv1: 1x1, cin -> cb, no bias ; bn1
    p["w1"] = w(k[0], (cin, cb))
    p["s1"], p["b1"] = _folded_bn(k[1], k[2], k[3], k[4], cb)
    # conv2: 3x3, cb -> cb, pad 1, no bias ; bn2   (HWIO layout)
    p["w2_4d"] = w(k[5], (3, 3, cb, cb))
    p["s2"], p["b2"] = _folded_bn(k[6], k[7], k[8], k[9], cb)
    # conv3: 1x1, cb -> cout, no bias ; bn3
    p["w3"] = w(k[10], (cb, cout))
    p["s3"], p["b3"] = _folded_bn(k[11], k[12], k[13], k[14], cout)
    # SE: 1x1 convs with bias
    p["se_w1"] = w(k[15], (cout, cse))
    p["se_b1"] = w(k[16], (1, cse))
    p["se_w2"] = w(k[17], (cse, cout))
    p["se_b2"] = w(k[18], (1, cout))
    # skip: 1x1 conv, cin -> cout, no bias ; bn_skip  (cin != cout here)
    p["wskip"] = w(k[19], (cin, cout))
    p["sskip"], p["bskip"] = _folded_bn(k[20], k[21], k[22], k[23], cout)
    return p


# ---------------------------------------------------------------------------
# Pure-JAX reference (for correctness check)
# ---------------------------------------------------------------------------
def reference_forward(x_nchw, p):
    x = jnp.transpose(x_nchw, (0, 2, 3, 1))  # NHWC

    def conv1x1(z, wm):
        return jnp.einsum("nhwc,cd->nhwd", z, wm)

    a1 = jax.nn.relu(conv1x1(x, p["w1"]) * p["s1"][0] + p["b1"][0])
    a2 = lax.conv_general_dilated(
        a1, p["w2_4d"], window_strides=(1, 1), padding="SAME",
        dimension_numbers=("NHWC", "HWIO", "NHWC"))
    a2 = jax.nn.relu(a2 * p["s2"][0] + p["b2"][0])
    out = conv1x1(a2, p["w3"]) * p["s3"][0] + p["b3"][0]
    skip = conv1x1(x, p["wskip"]) * p["sskip"][0] + p["bskip"][0]

    pooled = jnp.mean(out, axis=(1, 2))                                   # (N, Cout)
    h = jax.nn.relu(pooled @ p["se_w1"] + p["se_b1"][0])
    s = jax.nn.sigmoid(h @ p["se_w2"] + p["se_b2"][0])
    y = jax.nn.relu(out * s[:, None, None, :] + skip)
    return jnp.transpose(y, (0, 3, 1, 2))


if __name__ == "__main__":
    N, Cin, H, W = 2, 4, 16, 16
    Cout = 32  # bottleneck = 8, se_channels = 2

    key = jax.random.PRNGKey(0)
    kx, kp = jax.random.split(key)
    x = jax.random.normal(kx, (N, Cin, H, W), jnp.float32)
    params = init_params(kp, Cin, Cout)

    y_ref = reference_forward(x, params)

    # f32 operand path, one image per grid step: tight semantics check.
    y32 = jax.block_until_ready(
        residual_block_2d(x, params, compute_dtype=jnp.float32, b_blk=1))
    assert y32.shape == (N, Cout, H, W), y32.shape
    np.testing.assert_allclose(np.asarray(y32), np.asarray(y_ref),
                               rtol=1e-4, atol=1e-4)

    # Default bf16 MXU staging (v6e/v7x friendly) + 2 images per grid step.
    y16 = jax.block_until_ready(residual_block_2d(x, params, b_blk=2))
    np.testing.assert_allclose(np.asarray(y16), np.asarray(y_ref),
                               rtol=3e-2, atol=3e-2)

    print("KERNEL_OK")
</pallas_src>

<mosaic_0001>
module attributes {stable_mosaic.version = 11 : i64} {
  func.func @_block_kernel(%arg0: i32, %arg1: memref<1x4x256xf32, #tpu.memory_space<vmem>>, %arg2: memref<40x4xf32, #tpu.memory_space<vmem>>, %arg3: memref<40x1xf32, #tpu.memory_space<vmem>>, %arg4: memref<40x1xf32, #tpu.memory_space<vmem>>, %arg5: memref<8x72xf32, #tpu.memory_space<vmem>>, %arg6: memref<8x1xf32, #tpu.memory_space<vmem>>, %arg7: memref<8x1xf32, #tpu.memory_space<vmem>>, %arg8: memref<32x8xf32, #tpu.memory_space<vmem>>, %arg9: memref<32x1xf32, #tpu.memory_space<vmem>>, %arg10: memref<32x1xf32, #tpu.memory_space<vmem>>, %arg11: memref<2x32xf32, #tpu.memory_space<vmem>>, %arg12: memref<2x1xf32, #tpu.memory_space<vmem>>, %arg13: memref<32x2xf32, #tpu.memory_space<vmem>>, %arg14: memref<32x1xf32, #tpu.memory_space<vmem>>, %arg15: memref<1x32x256xf32, #tpu.memory_space<vmem>>, %arg16: memref<1x3x8x512xf32, #tpu.memory_space<vmem>>, %arg17: memref<1x72x256xf32, #tpu.memory_space<vmem>>) attributes {dimension_semantics = [#tpu.dimension_semantics<parallel>], iteration_bounds = array<i64: 2>, scalar_prefetch = 0 : i64, scratch_operands = 2 : i64, tpu.core_type = #tpu.core_type<tc>, window_params = [{transform_indices = @transform_0, window_bounds = array<i64: 1, 4, 256>}, {pipeline_mode = #tpu.pipeline_mode<synchronous>, transform_indices = @transform_1, window_bounds = array<i64: 40, 4>}, {pipeline_mode = #tpu.pipeline_mode<synchronous>, transform_indices = @transform_2, window_bounds = array<i64: 40, 1>}, {pipeline_mode = #tpu.pipeline_mode<synchronous>, transform_indices = @transform_3, window_bounds = array<i64: 40, 1>}, {pipeline_mode = #tpu.pipeline_mode<synchronous>, transform_indices = @transform_4, window_bounds = array<i64: 8, 72>}, {pipeline_mode = #tpu.pipeline_mode<synchronous>, transform_indices = @transform_5, window_bounds = array<i64: 8, 1>}, {pipeline_mode = #tpu.pipeline_mode<synchronous>, transform_indices = @transform_6, window_bounds = array<i64: 8, 1>}, {pipeline_mode = #tpu.pipeline_mode<synchronous>, transform_indices = @transform_7, window_bounds = array<i64: 32, 8>}, {pipeline_mode = #tpu.pipeline_mode<synchronous>, transform_indices = @transform_8, window_bounds = array<i64: 32, 1>}, {pipeline_mode = #tpu.pipeline_mode<synchronous>, transform_indices = @transform_9, window_bounds = array<i64: 32, 1>}, {pipeline_mode = #tpu.pipeline_mode<synchronous>, transform_indices = @transform_10, window_bounds = array<i64: 2, 32>}, {pipeline_mode = #tpu.pipeline_mode<synchronous>, transform_indices = @transform_11, window_bounds = array<i64: 2, 1>}, {pipeline_mode = #tpu.pipeline_mode<synchronous>, transform_indices = @transform_12, window_bounds = array<i64: 32, 2>}, {pipeline_mode = #tpu.pipeline_mode<synchronous>, transform_indices = @transform_13, window_bounds = array<i64: 32, 1>}, {transform_indices = @transform_14, window_bounds = array<i64: 1, 32, 256>}]} {
    %cst = arith.constant 0.000000e+00 : f32
    %0 = vector.broadcast %cst : f32 to vector<8x128xf32>
    %cst_0 = arith.constant 0.000000e+00 : f32
    %1 = vector.broadcast %cst_0 : f32 to vector<8x128xf32>
    %c0 = arith.constant 0 : index
    %c0_1 = arith.constant 0 : index
    %c0_2 = arith.constant 0 : index
    %c0_3 = arith.constant 0 : index
    %2 = vector.load %arg16[%c0, %c0_1, %c0_2, %c0_3] : memref<1x3x8x512xf32, #tpu.memory_space<vmem>>, vector<1x1x8x128xf32>
    %3 = vector.shape_cast %2 : vector<1x1x8x128xf32> to vector<8x128xf32>
    %4 = vector.shape_cast %0 : vector<8x128xf32> to vector<1x1x8x128xf32>
    tpu.vector_store %arg16[%c0, %c0_1, %c0_2, %c0_3], %4 {strides = array<i32>} : memref<1x3x8x512xf32, #tpu.memory_space<vmem>>, vector<1x1x8x128xf32>,
    %c0_4 = arith.constant 0 : index
    %c0_5 = arith.constant 0 : index
    %c0_6 = arith.constant 0 : index
    %c384 = arith.constant 384 : index
    %5 = vector.load %arg16[%c0_4, %c0_5, %c0_6, %c384] : memref<1x3x8x512xf32, #tpu.memory_space<vmem>>, vector<1x1x8x128xf32>
    %6 = vector.shape_cast %5 : vector<1x1x8x128xf32> to vector<8x128xf32>
    %7 = vector.shape_cast %1 : vector<8x128xf32> to vector<1x1x8x128xf32>
    tpu.vector_store %arg16[%c0_4, %c0_5, %c0_6, %c384], %7 {strides = array<i32>} : memref<1x3x8x512xf32, #tpu.memory_space<vmem>>, vector<1x1x8x128xf32>,
    %c0_7 = arith.constant 0 : index
    %c1 = arith.constant 1 : index
    %c0_8 = arith.constant 0 : index
    %c0_9 = arith.constant 0 : index
    %8 = vector.load %arg16[%c0_7, %c1, %c0_8, %c0_9] : memref<1x3x8x512xf32, #tpu.memory_space<vmem>>, vector<1x1x8x128xf32>
    %9 = vector.shape_cast %8 : vector<1x1x8x128xf32> to vector<8x128xf32>
    %10 = vector.shape_cast %0 : vector<8x128xf32> to vector<1x1x8x128xf32>
    tpu.vector_store %arg16[%c0_7, %c1, %c0_8, %c0_9], %10 {strides = array<i32>} : memref<1x3x8x512xf32, #tpu.memory_space<vmem>>, vector<1x1x8x128xf32>,
    %c0_10 = arith.constant 0 : index
    %c1_11 = arith.constant 1 : index
    %c0_12 = arith.constant 0 : index
    %c384_13 = arith.constant 384 : index
    %11 = vector.load %arg16[%c0_10, %c1_11, %c0_12, %c384_13] : memref<1x3x8x512xf32, #tpu.memory_space<vmem>>, vector<1x1x8x128xf32>
    %12 = vector.shape_cast %11 : vector<1x1x8x128xf32> to vector<8x128xf32>
    %13 = vector.shape_cast %1 : vector<8x128xf32> to vector<1x1x8x128xf32>
    tpu.vector_store %arg16[%c0_10, %c1_11, %c0_12, %c384_13], %13 {strides = array<i32>} : memref<1x3x8x512xf32, #tpu.memory_space<vmem>>, vector<1x1x8x128xf32>,
    %c0_14 = arith.constant 0 : index
    %c2 = arith.constant 2 : index
    %c0_15 = arith.constant 0 : index
    %c0_16 = arith.constant 0 : index
    %14 = vector.load %arg16[%c0_14, %c2, %c0_15, %c0_16] : memref<1x3x8x512xf32, #tpu.memory_space<vmem>>, vector<1x1x8x128xf32>
    %15 = vector.shape_cast %14 : vector<1x1x8x128xf32> to vector<8x128xf32>
    %16 = vector.shape_cast %0 : vector<8x128xf32> to vector<1x1x8x128xf32>
    tpu.vector_store %arg16[%c0_14, %c2, %c0_15, %c0_16], %16 {strides = array<i32>} : memref<1x3x8x512xf32, #tpu.memory_space<vmem>>, vector<1x1x8x128xf32>,
    %c0_17 = arith.constant 0 : index
    %c2_18 = arith.constant 2 : index
    %c0_19 = arith.constant 0 : index
    %c384_20 = arith.constant 384 : index
    %17 = vector.load %arg16[%c0_17, %c2_18, %c0_19, %c384_20] : memref<1x3x8x512xf32, #tpu.memory_space<vmem>>, vector<1x1x8x128xf32>
    %18 = vector.shape_cast %17 : vector<1x1x8x128xf32> to vector<8x128xf32>
    %19 = vector.shape_cast %1 : vector<8x128xf32> to vector<1x1x8x128xf32>
    tpu.vector_store %arg16[%c0_17, %c2_18, %c0_19, %c384_20], %19 {strides = array<i32>} : memref<1x3x8x512xf32, #tpu.memory_space<vmem>>, vector<1x1x8x128xf32>,
    %20 = tpu.iota {dimensions = array<i32: 1>} : vector<1x256xi32>
    %c16_i32 = arith.constant 16 : i32
    %c0_i32 = arith.constant 0 : i32
    %21 = arith.cmpi eq, %c16_i32, %c0_i32 : i32
    %c1_i32 = arith.constant 1 : i32
    %22 = arith.select %21, %c1_i32, %c16_i32 : i32
    %23 = vector.broadcast %22 : i32 to vector<1x256xi32>
    %24 = arith.remsi %20, %23 : vector<1x256xi32>
    %c0_i32_21 = arith.constant 0 : i32
    %25 = vector.broadcast %c0_i32_21 : i32 to vector<1x256xi32>
    %26 = arith.cmpi ne, %24, %25 : vector<1x256xi32>
    %c0_i32_22 = arith.constant 0 : i32
    %27 = vector.broadcast %c0_i32_22 : i32 to vector<1x256xi32>
    %28 = arith.cmpi slt, %24, %27 : vector<1x256xi32>
    %c0_i32_23 = arith.constant 0 : i32
    %29 = arith.cmpi slt, %22, %c0_i32_23 : i32
    %30 = vector.broadcast %29 : i1 to vector<1x256xi1>
    %31 = vector.broadcast %30 : vector<1x256xi1> to vector<1x256xi1>
    %32 = arith.xori %28, %31 : vector<1x256xi1>
    %33 = arith.andi %32, %26 : vector<1x256xi1>
    %34 = vector.broadcast %22 : i32 to vector<1x256xi32>
    %35 = arith.addi %24, %34 : vector<1x256xi32>
    %36 = arith.select %33, %35, %24 : vector<1x256xi1>, vector<1x256xi32>
    %c0_24 = arith.constant 0 : index
    %c0_25 = arith.constant 0 : index
    %c0_26 = arith.constant 0 : index
    %37 = vector.load %arg1[%c0_24, %c0_25, %c0_26] : memref<1x4x256xf32, #tpu.memory_space<vmem>>, vector<1x4x256xf32>
    %38 = vector.shape_cast %37 : vector<1x4x256xf32> to vector<4x256xf32>
    %c0_27 = arith.constant 0 : index
    %c0_28 = arith.constant 0 : index
    %39 = vector.load %arg2[%c0_27, %c0_28] : memref<40x4xf32, #tpu.memory_space<vmem>>, vector<40x4xf32>
    %cst_29 = arith.constant dense<0.000000e+00> : vector<40x256xf32>
    %40 = tpu.matmul %39, %38, %cst_29 {dimension_numbers = #tpu.dot_dimension_numbers<[1], [0], [0], [1], [0, 0, 1, 1], [], []>} : vector<40x4xf32>, vector<4x256xf32>, vector<40x256xf32> -> vector<40x256xf32>
    %c0_30 = arith.constant 0 : index
    %c0_31 = arith.constant 0 : index
    %41 = vector.load %arg3[%c0_30, %c0_31] : memref<40x1xf32, #tpu.memory_space<vmem>>, vector<40x1xf32>
    %42 = vector.broadcast %41 : vector<40x1xf32> to vector<40x256xf32>
    %43 = arith.mulf %40, %42 : vector<40x256xf32>
    %c0_32 = arith.constant 0 : index
    %c0_33 = arith.constant 0 : index
    %44 = vector.load %arg4[%c0_32, %c0_33] : memref<40x1xf32, #tpu.memory_space<vmem>>, vector<40x1xf32>
    %45 = vector.broadcast %44 : vector<40x1xf32> to vector<40x256xf32>
    %46 = arith.addf %43, %45 : vector<40x256xf32>
    %47 = vector.extract_strided_slice %46 {offsets = [0, 0], sizes = [8, 256], strides = [1, 1]} : vector<40x256xf32> to vector<8x256xf32>
    %cst_34 = arith.constant 0.000000e+00 : f32
    %48 = vector.broadcast %cst_34 : f32 to vector<8x256xf32>
    %49 = arith.maximumf %47, %48 : vector<8x256xf32>
    %50 = vector.extract_strided_slice %46 {offsets = [8, 0], sizes = [32, 256], strides = [1, 1]} : vector<40x256xf32> to vector<32x256xf32>
    %c15_i32 = arith.constant 15 : i32
    %51 = vector.broadcast %c15_i32 : i32 to vector<1x256xi32>
    %52 = arith.cmpi eq, %36, %51 : vector<1x256xi32>
    %cst_35 = arith.constant 0.000000e+00 : f32
    %53 = vector.shape_cast %52 : vector<1x256xi1> to vector<1x256xi1>
    %54 = vector.broadcast %53 : vector<1x256xi1> to vector<8x256xi1>
    %55 = vector.broadcast %cst_35 : f32 to vector<8x256xf32>
    %56 = arith.select %54, %55, %49 : vector<8x256xi1>, vector<8x256xf32>
    %c0_i32_36 = arith.constant 0 : i32
    %57 = vector.broadcast %c0_i32_36 : i32 to vector<1x256xi32>
    %58 = arith.cmpi eq, %36, %57 : vector<1x256xi32>
    %cst_37 = arith.constant 0.000000e+00 : f32
    %59 = vector.shape_cast %58 : vector<1x256xi1> to vector<1x256xi1>
    %60 = vector.broadcast %59 : vector<1x256xi1> to vector<8x256xi1>
    %61 = vector.broadcast %cst_37 : f32 to vector<8x256xf32>
    %62 = arith.select %60, %61, %49 : vector<8x256xi1>, vector<8x256xf32>
    %c0_38 = arith.constant 0 : index
    %c0_39 = arith.constant 0 : index
    %c0_40 = arith.constant 0 : index
    %c128 = arith.constant 128 : index
    %63 = vector.load %arg16[%c0_38, %c0_39, %c0_40, %c128] : memref<1x3x8x512xf32, #tpu.memory_space<vmem>>, vector<1x1x8x256xf32>
    %64 = vector.shape_cast %63 : vector<1x1x8x256xf32> to vector<8x256xf32>
    %65 = vector.shape_cast %49 : vector<8x256xf32> to vector<1x1x8x256xf32>
    tpu.vector_store %arg16[%c0_38, %c0_39, %c0_40, %c128], %65 {strides = array<i32>} : memref<1x3x8x512xf32, #tpu.memory_space<vmem>>, vector<1x1x8x256xf32>,
    %c0_41 = arith.constant 0 : index
    %c1_42 = arith.constant 1 : index
    %c0_43 = arith.constant 0 : index
    %c128_44 = arith.constant 128 : index
    %66 = vector.load %arg16[%c0_41, %c1_42, %c0_43, %c128_44] : memref<1x3x8x512xf32, #tpu.memory_space<vmem>>, vector<1x1x8x256xf32>
    %67 = vector.shape_cast %66 : vector<1x1x8x256xf32> to vector<8x256xf32>
    %68 = vector.shape_cast %56 : vector<8x256xf32> to vector<1x1x8x256xf32>
    tpu.vector_store %arg16[%c0_41, %c1_42, %c0_43, %c128_44], %68 {strides = array<i32>} : memref<1x3x8x512xf32, #tpu.memory_space<vmem>>, vector<1x1x8x256xf32>,
    %c0_45 = arith.constant 0 : index
    %c2_46 = arith.constant 2 : index
    %c0_47 = arith.constant 0 : index
    %c128_48 = arith.constant 128 : index
    %69 = vector.load %arg16[%c0_45, %c2_46, %c0_47, %c128_48] : memref<1x3x8x512xf32, #tpu.memory_space<vmem>>, vector<1x1x8x256xf32>
    %70 = vector.shape_cast %69 : vector<1x1x8x256xf32> to vector<8x256xf32>
    %71 = vector.shape_cast %62 : vector<8x256xf32> to vector<1x1x8x256xf32>
    tpu.vector_store %arg16[%c0_45, %c2_46, %c0_47, %c128_48], %71 {strides = array<i32>} : memref<1x3x8x512xf32, #tpu.memory_space<vmem>>, vector<1x1x8x256xf32>,
    %c0_49 = arith.constant 0 : index
    %c1_50 = arith.constant 1 : index
    %c0_51 = arith.constant 0 : index
    %c111 = arith.constant 111 : index
    %72 = vector.load %arg16[%c0_49, %c1_50, %c0_51, %c111] : memref<1x3x8x512xf32, #tpu.memory_space<vmem>>, vector<1x1x8x256xf32>
    %73 = vector.shape_cast %72 : vector<1x1x8x256xf32> to vector<8x256xf32>
    %c0_52 = arith.constant 0 : index
    %c0_53 = arith.constant 0 : index
    %c0_54 = arith.constant 0 : index
    %74 = vector.load %arg17[%c0_52, %c0_53, %c0_54] : memref<1x72x256xf32, #tpu.memory_space<vmem>>, vector<1x8x256xf32>
    %75 = vector.shape_cast %74 : vector<1x8x256xf32> to vector<8x256xf32>
    %76 = vector.shape_cast %73 : vector<8x256xf32> to vector<1x8x256xf32>
    tpu.vector_store %arg17[%c0_52, %c0_53, %c0_54], %76 {strides = array<i32>} : memref<1x72x256xf32, #tpu.memory_space<vmem>>, vector<1x8x256xf32>,
    %c0_55 = arith.constant 0 : index
    %c0_56 = arith.constant 0 : index
    %c0_57 = arith.constant 0 : index
    %c112 = arith.constant 112 : index
    %77 = vector.load %arg16[%c0_55, %c0_56, %c0_57, %c112] : memref<1x3x8x512xf32, #tpu.memory_space<vmem>>, vector<1x1x8x256xf32>
    %78 = vector.shape_cast %77 : vector<1x1x8x256xf32> to vector<8x256xf32>
    %c0_58 = arith.constant 0 : index
    %c8 = arith.constant 8 : index
    %c0_59 = arith.constant 0 : index
    %79 = vector.load %arg17[%c0_58, %c8, %c0_59] : memref<1x72x256xf32, #tpu.memory_space<vmem>>, vector<1x8x256xf32>
    %80 = vector.shape_cast %79 : vector<1x8x256xf32> to vector<8x256xf32>
    %81 = vector.shape_cast %78 : vector<8x256xf32> to vector<1x8x256xf32>
    tpu.vector_store %arg17[%c0_58, %c8, %c0_59], %81 {strides = array<i32>} : memref<1x72x256xf32, #tpu.memory_space<vmem>>, vector<1x8x256xf32>,
    %c0_60 = arith.constant 0 : index
    %c2_61 = arith.constant 2 : index
    %c0_62 = arith.constant 0 : index
    %c113 = arith.constant 113 : index
    %82 = vector.load %arg16[%c0_60, %c2_61, %c0_62, %c113] : memref<1x3x8x512xf32, #tpu.memory_space<vmem>>, vector<1x1x8x256xf32>
    %83 = vector.shape_cast %82 : vector<1x1x8x256xf32> to vector<8x256xf32>
    %c0_63 = arith.constant 0 : index
    %c16 = arith.constant 16 : index
    %c0_64 = arith.constant 0 : index
    %84 = vector.load %arg17[%c0_63, %c16, %c0_64] : memref<1x72x256xf32, #tpu.memory_space<vmem>>, vector<1x8x256xf32>
    %85 = vector.shape_cast %84 : vector<1x8x256xf32> to vector<8x256xf32>
    %86 = vector.shape_cast %83 : vector<8x256xf32> to vector<1x8x256xf32>
    tpu.vector_store %arg17[%c0_63, %c16, %c0_64], %86 {strides = array<i32>} : memref<1x72x256xf32, #tpu.memory_space<vmem>>, vector<1x8x256xf32>,
    %c0_65 = arith.constant 0 : index
    %c1_66 = arith.constant 1 : index
    %c0_67 = arith.constant 0 : index
    %c127 = arith.constant 127 : index
    %87 = vector.load %arg16[%c0_65, %c1_66, %c0_67, %c127] : memref<1x3x8x512xf32, #tpu.memory_space<vmem>>, vector<1x1x8x256xf32>
    %88 = vector.shape_cast %87 : vector<1x1x8x256xf32> to vector<8x256xf32>
    %c0_68 = arith.constant 0 : index
    %c24 = arith.constant 24 : index
    %c0_69 = arith.constant 0 : index
    %89 = vector.load %arg17[%c0_68, %c24, %c0_69] : memref<1x72x256xf32, #tpu.memory_space<vmem>>, vector<1x8x256xf32>
    %90 = vector.shape_cast %89 : vector<1x8x256xf32> to vector<8x256xf32>
    %91 = vector.shape_cast %88 : vector<8x256xf32> to vector<1x8x256xf32>
    tpu.vector_store %arg17[%c0_68, %c24, %c0_69], %91 {strides = array<i32>} : memref<1x72x256xf32, #tpu.memory_space<vmem>>, vector<1x8x256xf32>,
    %c0_70 = arith.constant 0 : index
    %c0_71 = arith.constant 0 : index
    %c0_72 = arith.constant 0 : index
    %c128_73 = arith.constant 128 : index
    %92 = vector.load %arg16[%c0_70, %c0_71, %c0_72, %c128_73] : memref<1x3x8x512xf32, #tpu.memory_space<vmem>>, vector<1x1x8x256xf32>
    %93 = vector.shape_cast %92 : vector<1x1x8x256xf32> to vector<8x256xf32>
    %c0_74 = arith.constant 0 : index
    %c32 = arith.constant 32 : index
    %c0_75 = arith.constant 0 : index
    %94 = vector.load %arg17[%c0_74, %c32, %c0_75] : memref<1x72x256xf32, #tpu.memory_space<vmem>>, vector<1x8x256xf32>
    %95 = vector.shape_cast %94 : vector<1x8x256xf32> to vector<8x256xf32>
    %96 = vector.shape_cast %93 : vector<8x256xf32> to vector<1x8x256xf32>
    tpu.vector_store %arg17[%c0_74, %c32, %c0_75], %96 {strides = array<i32>} : memref<1x72x256xf32, #tpu.memory_space<vmem>>, vector<1x8x256xf32>,
    %c0_76 = arith.constant 0 : index
    %c2_77 = arith.constant 2 : index
    %c0_78 = arith.constant 0 : index
    %c129 = arith.constant 129 : index
    %97 = vector.load %arg16[%c0_76, %c2_77, %c0_78, %c129] : memref<1x3x8x512xf32, #tpu.memory_space<vmem>>, vector<1x1x8x256xf32>
    %98 = vector.shape_cast %97 : vector<1x1x8x256xf32> to vector<8x256xf32>
    %c0_79 = arith.constant 0 : index
    %c40 = arith.constant 40 : index
    %c0_80 = arith.constant 0 : index
    %99 = vector.load %arg17[%c0_79, %c40, %c0_80] : memref<1x72x256xf32, #tpu.memory_space<vmem>>, vector<1x8x256xf32>
    %100 = vector.shape_cast %99 : vector<1x8x256xf32> to vector<8x256xf32>
    %101 = vector.shape_cast %98 : vector<8x256xf32> to vector<1x8x256xf32>
    tpu.vector_store %arg17[%c0_79, %c40, %c0_80], %101 {strides = array<i32>} : memref<1x72x256xf32, #tpu.memory_space<vmem>>, vector<1x8x256xf32>,
    %c0_81 = arith.constant 0 : index
    %c1_82 = arith.constant 1 : index
    %c0_83 = arith.constant 0 : index
    %c143 = arith.constant 143 : index
    %102 = vector.load %arg16[%c0_81, %c1_82, %c0_83, %c143] : memref<1x3x8x512xf32, #tpu.memory_space<vmem>>, vector<1x1x8x256xf32>
    %103 = vector.shape_cast %102 : vector<1x1x8x256xf32> to vector<8x256xf32>
    %c0_84 = arith.constant 0 : index
    %c48 = arith.constant 48 : index
    %c0_85 = arith.constant 0 : index
    %104 = vector.load %arg17[%c0_84, %c48, %c0_85] : memref<1x72x256xf32, #tpu.memory_space<vmem>>, vector<1x8x256xf32>
    %105 = vector.shape_cast %104 : vector<1x8x256xf32> to vector<8x256xf32>
    %106 = vector.shape_cast %103 : vector<8x256xf32> to vector<1x8x256xf32>
    tpu.vector_store %arg17[%c0_84, %c48, %c0_85], %106 {strides = array<i32>} : memref<1x72x256xf32, #tpu.memory_space<vmem>>, vector<1x8x256xf32>,
    %c0_86 = arith.constant 0 : index
    %c0_87 = arith.constant 0 : index
    %c0_88 = arith.constant 0 : index
    %c144 = arith.constant 144 : index
    %107 = vector.load %arg16[%c0_86, %c0_87, %c0_88, %c144] : memref<1x3x8x512xf32, #tpu.memory_space<vmem>>, vector<1x1x8x256xf32>
    %108 = vector.shape_cast %107 : vector<1x1x8x256xf32> to vector<8x256xf32>
    %c0_89 = arith.constant 0 : index
    %c56 = arith.constant 56 : index
    %c0_90 = arith.constant 0 : index
    %109 = vector.load %arg17[%c0_89, %c56, %c0_90] : memref<1x72x256xf32, #tpu.memory_space<vmem>>, vector<1x8x256xf32>
    %110 = vector.shape_cast %109 : vector<1x8x256xf32> to vector<8x256xf32>
    %111 = vector.shape_cast %108 : vector<8x256xf32> to vector<1x8x256xf32>
    tpu.vector_store %arg17[%c0_89, %c56, %c0_90], %111 {strides = array<i32>} : memref<1x72x256xf32, #tpu.memory_space<vmem>>, vector<1x8x256xf32>,
    %c0_91 = arith.constant 0 : index
    %c2_92 = arith.constant 2 : index
    %c0_93 = arith.constant 0 : index
    %c145 = arith.constant 145 : index
    %112 = vector.load %arg16[%c0_91, %c2_92, %c0_93, %c145] : memref<1x3x8x512xf32, #tpu.memory_space<vmem>>, vector<1x1x8x256xf32>
    %113 = vector.shape_cast %112 : vector<1x1x8x256xf32> to vector<8x256xf32>
    %c0_94 = arith.constant 0 : index
    %c64 = arith.constant 64 : index
    %c0_95 = arith.constant 0 : index
    %114 = vector.load %arg17[%c0_94, %c64, %c0_95] : memref<1x72x256xf32, #tpu.memory_space<vmem>>, vector<1x8x256xf32>
    %115 = vector.shape_cast %114 : vector<1x8x256xf32> to vector<8x256xf32>
    %116 = vector.shape_cast %113 : vector<8x256xf32> to vector<1x8x256xf32>
    tpu.vector_store %arg17[%c0_94, %c64, %c0_95], %116 {strides = array<i32>} : memref<1x72x256xf32, #tpu.memory_space<vmem>>, vector<1x8x256xf32>,
    %c0_96 = arith.constant 0 : index
    %c0_97 = arith.constant 0 : index
    %117 = vector.load %arg5[%c0_96, %c0_97] : memref<8x72xf32, #tpu.memory_space<vmem>>, vector<8x72xf32>
    %c0_98 = arith.constant 0 : index
    %c0_99 = arith.constant 0 : index
    %c0_100 = arith.constant 0 : index
    %118 = vector.load %arg17[%c0_98, %c0_99, %c0_100] : memref<1x72x256xf32, #tpu.memory_space<vmem>>, vector<1x72x256xf32>
    %119 = vector.shape_cast %118 : vector<1x72x256xf32> to vector<72x256xf32>
    %cst_101 = arith.constant dense<0.000000e+00> : vector<8x256xf32>
    %120 = tpu.matmul %117, %119, %cst_101 {dimension_numbers = #tpu.dot_dimension_numbers<[1], [0], [0], [1], [0, 0, 1, 1], [], []>} : vector<8x72xf32>, vector<72x256xf32>, vector<8x256xf32> -> vector<8x256xf32>
    %c0_102 = arith.constant 0 : index
    %c0_103 = arith.constant 0 : index
    %121 = vector.load %arg6[%c0_102, %c0_103] : memref<8x1xf32, #tpu.memory_space<vmem>>, vector<8x1xf32>
    %122 = vector.broadcast %121 : vector<8x1xf32> to vector<8x256xf32>
    %123 = arith.mulf %120, %122 : vector<8x256xf32>
    %c0_104 = arith.constant 0 : index
    %c0_105 = arith.constant 0 : index
    %124 = vector.load %arg7[%c0_104, %c0_105] : memref<8x1xf32, #tpu.memory_space<vmem>>, vector<8x1xf32>
    %125 = vector.broadcast %124 : vector<8x1xf32> to vector<8x256xf32>
    %126 = arith.addf %123, %125 : vector<8x256xf32>
    %cst_106 = arith.constant 0.000000e+00 : f32
    %127 = vector.broadcast %cst_106 : f32 to vector<8x256xf32>
    %128 = arith.maximumf %126, %127 : vector<8x256xf32>
    %c0_107 = arith.constant 0 : index
    %c0_108 = arith.constant 0 : index
    %129 = vector.load %arg8[%c0_107, %c0_108] : memref<32x8xf32, #tpu.memory_space<vmem>>, vector<32x8xf32>
    %cst_109 = arith.constant dense<0.000000e+00> : vector<32x256xf32>
    %130 = tpu.matmul %129, %128, %cst_109 {dimension_numbers = #tpu.dot_dimension_numbers<[1], [0], [0], [1], [0, 0, 1, 1], [], []>} : vector<32x8xf32>, vector<8x256xf32>, vector<32x256xf32> -> vector<32x256xf32>
    %c0_110 = arith.constant 0 : index
    %c0_111 = arith.constant 0 : index
    %131 = vector.load %arg9[%c0_110, %c0_111] : memref<32x1xf32, #tpu.memory_space<vmem>>, vector<32x1xf32>
    %132 = vector.broadcast %131 : vector<32x1xf32> to vector<32x256xf32>
    %133 = arith.mulf %130, %132 : vector<32x256xf32>
    %c0_112 = arith.constant 0 : index
    %c0_113 = arith.constant 0 : index
    %134 = vector.load %arg10[%c0_112, %c0_113] : memref<32x1xf32, #tpu.memory_space<vmem>>, vector<32x1xf32>
    %135 = vector.broadcast %134 : vector<32x1xf32> to vector<32x256xf32>
    %136 = arith.addf %133, %135 : vector<32x256xf32>
    %cst_114 = arith.constant dense<0.000000e+00> : vector<32xf32>
    %137 = vector.multi_reduction <add>, %136, %cst_114 [1] : vector<32x256xf32> to vector<32xf32>
    %138 = vector.shape_cast %137 : vector<32xf32> to vector<32x1xf32>
    %cst_115 = arith.constant 3.906250e-03 : f32
    %139 = vector.broadcast %cst_115 : f32 to vector<32x1xf32>
    %140 = arith.mulf %138, %139 : vector<32x1xf32>
    %c0_116 = arith.constant 0 : index
    %c0_117 = arith.constant 0 : index
    %141 = vector.load %arg11[%c0_116, %c0_117] : memref<2x32xf32, #tpu.memory_space<vmem>>, vector<2x32xf32>
    %cst_118 = arith.constant dense<0.000000e+00> : vector<2x1xf32>
    %142 = tpu.matmul %141, %140, %cst_118 {dimension_numbers = #tpu.dot_dimension_numbers<[1], [0], [0], [1], [0, 0, 1, 1], [], []>} : vector<2x32xf32>, vector<32x1xf32>, vector<2x1xf32> -> vector<2x1xf32>
    %c0_119 = arith.constant 0 : index
    %c0_120 = arith.constant 0 : index
    %143 = vector.load %arg12[%c0_119, %c0_120] : memref<2x1xf32, #tpu.memory_space<vmem>>, vector<2x1xf32>
    %144 = arith.addf %142, %143 : vector<2x1xf32>
    %cst_121 = arith.constant 0.000000e+00 : f32
    %145 = vector.broadcast %cst_121 : f32 to vector<2x1xf32>
    %146 = arith.maximumf %144, %145 : vector<2x1xf32>
    %c0_122 = arith.constant 0 : index
    %c0_123 = arith.constant 0 : index
    %147 = vector.load %arg13[%c0_122, %c0_123] : memref<32x2xf32, #tpu.memory_space<vmem>>, vector<32x2xf32>
    %cst_124 = arith.constant dense<0.000000e+00> : vector<32x1xf32>
    %148 = tpu.matmul %147, %146, %cst_124 {dimension_numbers = #tpu.dot_dimension_numbers<[1], [0], [0], [1], [0, 0, 1, 1], [], []>} : vector<32x2xf32>, vector<2x1xf32>, vector<32x1xf32> -> vector<32x1xf32>
    %c0_125 = arith.constant 0 : index
    %c0_126 = arith.constant 0 : index
    %149 = vector.load %arg14[%c0_125, %c0_126] : memref<32x1xf32, #tpu.memory_space<vmem>>, vector<32x1xf32>
    %150 = arith.addf %148, %149 : vector<32x1xf32>
    %151 = arith.negf %150 : vector<32x1xf32>
    %152 = math.exp %151 : vector<32x1xf32>
    %cst_127 = arith.constant 1.000000e+00 : f32
    %153 = vector.broadcast %cst_127 : f32 to vector<32x1xf32>
    %154 = arith.addf %153, %152 : vector<32x1xf32>
    %155 = arith.divf %153, %154 : vector<32x1xf32>
    %156 = vector.broadcast %155 : vector<32x1xf32> to vector<32x256xf32>
    %157 = arith.mulf %136, %156 : vector<32x256xf32>
    %158 = arith.addf %157, %50 : vector<32x256xf32>
    %cst_128 = arith.constant 0.000000e+00 : f32
    %159 = vector.broadcast %cst_128 : f32 to vector<32x256xf32>
    %160 = arith.maximumf %158, %159 : vector<32x256xf32>
    %c0_129 = arith.constant 0 : index
    %c0_130 = arith.constant 0 : index
    %c0_131 = arith.constant 0 : index
    %161 = vector.load %arg15[%c0_129, %c0_130, %c0_131] : memref<1x32x256xf32, #tpu.memory_space<vmem>>, vector<1x32x256xf32>
    %162 = vector.shape_cast %161 : vector<1x32x256xf32> to vector<32x256xf32>
    %163 = vector.shape_cast %160 : vector<32x256xf32> to vector<1x32x256xf32>
    tpu.vector_store %arg15[%c0_129, %c0_130, %c0_131], %163 {strides = array<i32>} : memref<1x32x256xf32, #tpu.memory_space<vmem>>, vector<1x32x256xf32>,
    return
  }
  func.func @transform_0(%arg0: i32) -> (i32, i32, i32) {
    %c0_i32 = arith.constant 0 : i32
    %c0_i32_0 = arith.constant 0 : i32
    %c0_i32_1 = arith.constant 0 : i32
    return %arg0, %c0_i32, %c0_i32_0 : i32, i32, i32
  }
  func.func @transform_1(%arg0: i32) -> (i32, i32) {
    %c0_i32 = arith.constant 0 : i32
    %c0_i32_0 = arith.constant 0 : i32
    %c0_i32_1 = arith.constant 0 : i32
    return %c0_i32, %c0_i32_0 : i32, i32
  }
  func.func @transform_2(%arg0: i32) -> (i32, i32) {
    %c0_i32 = arith.constant 0 : i32
    %c0_i32_0 = arith.constant 0 : i32
    %c0_i32_1 = arith.constant 0 : i32
    return %c0_i32, %c0_i32_0 : i32, i32
  }
  func.func @transform_3(%arg0: i32) -> (i32, i32) {
    %c0_i32 = arith.constant 0 : i32
    %c0_i32_0 = arith.constant 0 : i32
    %c0_i32_1 = arith.constant 0 : i32
    return %c0_i32, %c0_i32_0 : i32, i32
  }
  func.func @transform_4(%arg0: i32) -> (i32, i32) {
    %c0_i32 = arith.constant 0 : i32
    %c0_i32_0 = arith.constant 0 : i32
    %c0_i32_1 = arith.constant 0 : i32
    return %c0_i32, %c0_i32_0 : i32, i32
  }
  func.func @transform_5(%arg0: i32) -> (i32, i32) {
    %c0_i32 = arith.constant 0 : i32
    %c0_i32_0 = arith.constant 0 : i32
    %c0_i32_1 = arith.constant 0 : i32
    return %c0_i32, %c0_i32_0 : i32, i32
  }
  func.func @transform_6(%arg0: i32) -> (i32, i32) {
    %c0_i32 = arith.constant 0 : i32
    %c0_i32_0 = arith.constant 0 : i32
    %c0_i32_1 = arith.constant 0 : i32
    return %c0_i32, %c0_i32_0 : i32, i32
  }
  func.func @transform_7(%arg0: i32) -> (i32, i32) {
    %c0_i32 = arith.constant 0 : i32
    %c0_i32_0 = arith.constant 0 : i32
    %c0_i32_1 = arith.constant 0 : i32
    return %c0_i32, %c0_i32_0 : i32, i32
  }
  func.func @transform_8(%arg0: i32) -> (i32, i32) {
    %c0_i32 = arith.constant 0 : i32
    %c0_i32_0 = arith.constant 0 : i32
    %c0_i32_1 = arith.constant 0 : i32
    return %c0_i32, %c0_i32_0 : i32, i32
  }
  func.func @transform_9(%arg0: i32) -> (i32, i32) {
    %c0_i32 = arith.constant 0 : i32
    %c0_i32_0 = arith.constant 0 : i32
    %c0_i32_1 = arith.constant 0 : i32
    return %c0_i32, %c0_i32_0 : i32, i32
  }
  func.func @transform_10(%arg0: i32) -> (i32, i32) {
    %c0_i32 = arith.constant 0 : i32
    %c0_i32_0 = arith.constant 0 : i32
    %c0_i32_1 = arith.constant 0 : i32
    return %c0_i32, %c0_i32_0 : i32, i32
  }
  func.func @transform_11(%arg0: i32) -> (i32, i32) {
    %c0_i32 = arith.constant 0 : i32
    %c0_i32_0 = arith.constant 0 : i32
    %c0_i32_1 = arith.constant 0 : i32
    return %c0_i32, %c0_i32_0 : i32, i32
  }
  func.func @transform_12(%arg0: i32) -> (i32, i32) {
    %c0_i32 = arith.constant 0 : i32
    %c0_i32_0 = arith.constant 0 : i32
    %c0_i32_1 = arith.constant 0 : i32
    return %c0_i32, %c0_i32_0 : i32, i32
  }
  func.func @transform_13(%arg0: i32) -> (i32, i32) {
    %c0_i32 = arith.constant 0 : i32
    %c0_i32_0 = arith.constant 0 : i32
    %c0_i32_1 = arith.constant 0 : i32
    return %c0_i32, %c0_i32_0 : i32, i32
  }
  func.func @transform_14(%arg0: i32) -> (i32, i32, i32) {
    %c0_i32 = arith.constant 0 : i32
    %c0_i32_0 = arith.constant 0 : i32
    %c0_i32_1 = arith.constant 0 : i32
    return %arg0, %c0_i32, %c0_i32_0 : i32, i32, i32
  }
}

</mosaic_0001>

<llo_original>
// kernel: tpu_custom_call.1
$region0: #{tpu_custom_call.1}
  #allocation0 [shape = 'u32[]', space=smem, size = 0x4, offset = 0x4, fixed_abs, tag = 'smem constant byte address 0x4 - core index']
  #allocation1 [shape = 'u32[144,128]{1,0:T(1,128)}', space=vmem, size = 0x12000, scoped, tag = 'internal scratch']
  #allocation2 [shape = 'f32[1,3,8,512]{3,2,1,0:T(8,128)}', space=vmem, size = 0xc000, scoped, tag = 'scratch operand']
  #allocation3 [shape = 'f32[1,72,256]{2,1,0:T(8,128)}', space=vmem, size = 0x12000, scoped, tag = 'scratch operand']
  %s0 = inlined_call_operand.vmem [shape: f32[2,4,256], index: 0, kind: input, shape index: {}]
  %s1 = inlined_call_operand.vmem [shape: f32[40,4], index: 1, kind: input, shape index: {}]
  %s2 = inlined_call_operand.vmem [shape: f32[40,1], index: 2, kind: input, shape index: {}]
  %s3 = inlined_call_operand.vmem [shape: f32[40,1], index: 3, kind: input, shape index: {}]
  %s4 = inlined_call_operand.vmem [shape: f32[8,72], index: 4, kind: input, shape index: {}]
  %s5 = inlined_call_operand.vmem [shape: f32[8,1], index: 5, kind: input, shape index: {}]
  %s6 = inlined_call_operand.vmem [shape: f32[8,1], index: 6, kind: input, shape index: {}]
  %s7 = inlined_call_operand.vmem [shape: f32[32,8], index: 7, kind: input, shape index: {}]
  %s8 = inlined_call_operand.vmem [shape: f32[32,1], index: 8, kind: input, shape index: {}]
  %s9 = inlined_call_operand.vmem [shape: f32[32,1], index: 9, kind: input, shape index: {}]
  %s10 = inlined_call_operand.vmem [shape: f32[2,32], index: 10, kind: input, shape index: {}]
  %s11 = inlined_call_operand.vmem [shape: f32[2,1], index: 11, kind: input, shape index: {}]
  %s12 = inlined_call_operand.vmem [shape: f32[32,2], index: 12, kind: input, shape index: {}]
  %s13 = inlined_call_operand.vmem [shape: f32[32,1], index: 13, kind: input, shape index: {}]
  %s14 = inlined_call_operand.hbm [shape: f32[2,32,256], index: 14, kind: output, shape index: {}]
  %s15 = sld [smem:[#allocation0]]
  $region89: #{tpu_custom_call.1} parent=0
    _
  %s17 = ssub.s32 1, %s15
  %s18 = scalar_select 0, %s17, %s15
  $region1: #{tpu_custom_call.1} parent=0
    #allocation4 [shape = 'u8[65536]{0}', space=vmem, size = 0x10000, scoped, tag = 'output window, operand 0']
    #allocation5 [shape = 's32[2]{0}', space=sflag, size = 0x8, scoped, tag = 'scoped memory for tpu_custom_call.1']
    %19 = vsyncpa [#allocation5], 0
    %s20 = scalar_lea.sflag [#allocation5], 1
    %21 = vsyncpa %s20, 0
    loop: start=0, step=1, limit=4
    $region2: #{tpu_custom_call.1} parent=1 // loop_pre_header
      _
    $region3: #{tpu_custom_call.1} parent=1 // loop_header
      %s23 = sphi 0, %s27
      %p24 = scmp.ge.s32.totalorder %s23, 4
      %s33 = sphi 0, %s35
      %s36 = sphi 0, %s33
      %s37 = sphi 0, %s36
      %s53 = sphi 0, %s37
      %s57 = sphi 0, %s57
      %s59 = sphi 0, %s57
      %s60 = sphi 0, %s59
      %s74 = sphi 0, %s60
      %s78 = sphi 0, %s78
      %s80 = sphi 0, %s78
      %s81 = sphi 0, %s80
      %s95 = sphi 0, %s81
      %s99 = sphi 0, %s99
      %s101 = sphi 0, %s99
      %s102 = sphi 0, %s101
      %s116 = sphi 0, %s102
      %s120 = sphi 0, %s120
      %s122 = sphi 0, %s120
      %s123 = sphi 0, %s122
      %s137 = sphi 0, %s123
      %s141 = sphi 0, %s141
      %s143 = sphi 0, %s141
      %s144 = sphi 0, %s143
      %s158 = sphi 0, %s144
      %s162 = sphi 0, %s162
      %s164 = sphi 0, %s162
      %s165 = sphi 0, %s164
      %s179 = sphi 0, %s165
      %s183 = sphi 0, %s183
      %s185 = sphi 0, %s183
      %s186 = sphi 0, %s185
      %s200 = sphi 0, %s186
      %s204 = sphi 0, %s204
      %s206 = sphi 0, %s204
      %s207 = sphi 0, %s206
      %s221 = sphi 0, %s207
      %s225 = sphi 0, %s225
      %s227 = sphi 0, %s225
      %s228 = sphi 0, %s227
      %s242 = sphi 0, %s228
      %s246 = sphi 0, %s246
      %s248 = sphi 0, %s246
      %s249 = sphi 0, %s248
      %s263 = sphi 0, %s249
      %s267 = sphi 0, %s267
      %s269 = sphi 0, %s267
      %s270 = sphi 0, %s269
      %s284 = sphi 0, %s270
      %s288 = sphi 0, %s288
      %s290 = sphi 0, %s288
      %s291 = sphi 0, %s290
      %s305 = sphi 0, %s291
      %s309 = sphi 0, %s309
      %s311 = sphi 0, %s309
      %s312 = sphi 0, %s311
      %s326 = sphi 0, %s312
      %s332 = sphi 0, %s334
      %s335 = sphi 0, %s332
      %s336 = sphi 0, %s335
      %s352 = sphi 0, %s336
    $region4: #{tpu_custom_call.1} parent=1 // loop_header_branch
      %26 = sbr.rel (%p24) target = $region8
    $region5: #{tpu_custom_call.1} parent=1 // loop_body
      %s28 = ssub.s32 %s23, 1
      %s29 = ssub.s32 %s23, 2
      %s30 = sadd.s32 %s23, 1
      %s31 = ssub.s32 %s23, %s30
      %p32 = scmp.eq.s32.totalorder %s31, 0
      %s34 = sadd.s32 %s33, 1
      %s35 = scalar_select %p32, %s33, %s34
      %p38 = pneg %p32
      %p39 = scmp.eq.s32.totalorder %s23, 1
      %p40 = por %p38, %p39
      %p41 = scmp.ne.s32.totalorder %s33, %s36
      %p42 = scmp.eq.s32.totalorder %s23, 0
      %p43 = por %p41, %p42
      %p44 = scmp.ne.s32.totalorder %s33, %s36
      %p45 = scmp.eq.s32.totalorder %s28, 1
      %p46 = por %p44, %p45
      %p47 = scmp.ne.s32.totalorder %s36, %s37
      %p48 = scmp.eq.s32.totalorder %s28, 0
      %p49 = por %p47, %p48
      %p50 = scmp.ne.s32.totalorder %s36, %s37
      %p51 = scmp.eq.s32.totalorder %s29, 1
      %p52 = por %p50, %p51
      %p54 = scmp.ne.s32.totalorder %s37, %s53
      %p55 = scmp.eq.s32.totalorder %s29, 0
      %p56 = por %p54, %p55
      %s58 = sadd.s32 %s57, 1
      %p61 = scmp.eq.s32.totalorder %s23, 1
      %p62 = scmp.ne.s32.totalorder %s57, %s59
      %p63 = scmp.eq.s32.totalorder %s23, 0
      %p64 = por %p62, %p63
      %p65 = scmp.ne.s32.totalorder %s57, %s59
      %p66 = scmp.eq.s32.totalorder %s28, 1
      %p67 = por %p65, %p66
      %p68 = scmp.ne.s32.totalorder %s59, %s60
      %p69 = scmp.eq.s32.totalorder %s28, 0
      %p70 = por %p68, %p69
      %p71 = scmp.ne.s32.totalorder %s59, %s60
      %p72 = scmp.eq.s32.totalorder %s29, 1
      %p73 = por %p71, %p72
      %p75 = scmp.ne.s32.totalorder %s60, %s74
      %p76 = scmp.eq.s32.totalorder %s29, 0
      %p77 = por %p75, %p76
      %s79 = sadd.s32 %s78, 1
      %p82 = scmp.eq.s32.totalorder %s23, 1
      %p83 = scmp.ne.s32.totalorder %s78, %s80
      %p84 = scmp.eq.s32.totalorder %s23, 0
      %p85 = por %p83, %p84
      %p86 = scmp.ne.s32.totalorder %s78, %s80
      %p87 = scmp.eq.s32.totalorder %s28, 1
      %p88 = por %p86, %p87
      %p89 = scmp.ne.s32.totalorder %s80, %s81
      %p90 = scmp.eq.s32.totalorder %s28, 0
      %p91 = por %p89, %p90
      %p92 = scmp.ne.s32.totalorder %s80, %s81
      %p93 = scmp.eq.s32.totalorder %s29, 1
      %p94 = por %p92, %p93
      %p96 = scmp.ne.s32.totalorder %s81, %s95
      %p97 = scmp.eq.s32.totalorder %s29, 0
      %p98 = por %p96, %p97
      %s100 = sadd.s32 %s99, 1
      %p103 = scmp.eq.s32.totalorder %s23, 1
      %p104 = scmp.ne.s32.totalorder %s99, %s101
      %p105 = scmp.eq.s32.totalorder %s23, 0
      %p106 = por %p104, %p105
      %p107 = scmp.ne.s32.totalorder %s99, %s101
      %p108 = scmp.eq.s32.totalorder %s28, 1
      %p109 = por %p107, %p108
      %p110 = scmp.ne.s32.totalorder %s101, %s102
      %p111 = scmp.eq.s32.totalorder %s28, 0
      %p112 = por %p110, %p111
      %p113 = scmp.ne.s32.totalorder %s101, %s102
      %p114 = scmp.eq.s32.totalorder %s29, 1
      %p115 = por %p113, %p114
      %p117 = scmp.ne.s32.totalorder %s102, %s116
      %p118 = scmp.eq.s32.totalorder %s29, 0
      %p119 = por %p117, %p118
      %s121 = sadd.s32 %s120, 1
      %p124 = scmp.eq.s32.totalorder %s23, 1
      %p125 = scmp.ne.s32.totalorder %s120, %s122
      %p126 = scmp.eq.s32.totalorder %s23, 0
      %p127 = por %p125, %p126
      %p128 = scmp.ne.s32.totalorder %s120, %s122
      %p129 = scmp.eq.s32.totalorder %s28, 1
      %p130 = por %p128, %p129
      %p131 = scmp.ne.s32.totalorder %s122, %s123
      %p132 = scmp.eq.s32.totalorder %s28, 0
      %p133 = por %p131, %p132
      %p134 = scmp.ne.s32.totalorder %s122, %s123
      %p135 = scmp.eq.s32.totalorder %s29, 1
      %p136 = por %p134, %p135
      %p138 = scmp.ne.s32.totalorder %s123, %s137
      %p139 = scmp.eq.s32.totalorder %s29, 0
      %p140 = por %p138, %p139
      %s142 = sadd.s32 %s141, 1
      %p145 = scmp.eq.s32.totalorder %s23, 1
      %p146 = scmp.ne.s32.totalorder %s141, %s143
      %p147 = scmp.eq.s32.totalorder %s23, 0
      %p148 = por %p146, %p147
      %p149 = scmp.ne.s32.totalorder %s141, %s143
      %p150 = scmp.eq.s32.totalorder %s28, 1
      %p151 = por %p149, %p150
      %p152 = scmp.ne.s32.totalorder %s143, %s144
      %p153 = scmp.eq.s32.totalorder %s28, 0
      %p154 = por %p152, %p153
      %p155 = scmp.ne.s32.totalorder %s143, %s144
      %p156 = scmp.eq.s32.totalorder %s29, 1
      %p157 = por %p155, %p156
      %p159 = scmp.ne.s32.totalorder %s144, %s158
      %p160 = scmp.eq.s32.totalorder %s29, 0
      %p161 = por %p159, %p160
      %s163 = sadd.s32 %s162, 1
      %p166 = scmp.eq.s32.totalorder %s23, 1
      %p167 = scmp.ne.s32.totalorder %s162, %s164
      %p168 = scmp.eq.s32.totalorder %s23, 0
      %p169 = por %p167, %p168
      %p170 = scmp.ne.s32.totalorder %s162, %s164
      %p171 = scmp.eq.s32.totalorder %s28, 1
      %p172 = por %p170, %p171
      %p173 = scmp.ne.s32.totalorder %s164, %s165
      %p174 = scmp.eq.s32.totalorder %s28, 0
      %p175 = por %p173, %p174
      %p176 = scmp.ne.s32.totalorder %s164, %s165
      %p177 = scmp.eq.s32.totalorder %s29, 1
      %p178 = por %p176, %p177
      %p180 = scmp.ne.s32.totalorder %s165, %s179
      %p181 = scmp.eq.s32.totalorder %s29, 0
      %p182 = por %p180, %p181
      %s184 = sadd.s32 %s183, 1
      %p187 = scmp.eq.s32.totalorder %s23, 1
      %p188 = scmp.ne.s32.totalorder %s183, %s185
      %p189 = scmp.eq.s32.totalorder %s23, 0
      %p190 = por %p188, %p189
      %p191 = scmp.ne.s32.totalorder %s183, %s185
      %p192 = scmp.eq.s32.totalorder %s28, 1
      %p193 = por %p191, %p192
      %p194 = scmp.ne.s32.totalorder %s185, %s186
      %p195 = scmp.eq.s32.totalorder %s28, 0
      %p196 = por %p194, %p195
      %p197 = scmp.ne.s32.totalorder %s185, %s186
      %p198 = scmp.eq.s32.totalorder %s29, 1
      %p199 = por %p197, %p198
      %p201 = scmp.ne.s32.totalorder %s186, %s200
      %p202 = scmp.eq.s32.totalorder %s29, 0
      %p203 = por %p201, %p202
      %s205 = sadd.s32 %s204, 1
      %p208 = scmp.eq.s32.totalorder %s23, 1
      %p209 = scmp.ne.s32.totalorder %s204, %s206
      %p210 = scmp.eq.s32.totalorder %s23, 0
      %p211 = por %p209, %p210
      %p212 = scmp.ne.s32.totalorder %s204, %s206
      %p213 = scmp.eq.s32.totalorder %s28, 1
      %p214 = por %p212, %p213
      %p215 = scmp.ne.s32.totalorder %s206, %s207
      %p216 = scmp.eq.s32.totalorder %s28, 0
      %p217 = por %p215, %p216
      %p218 = scmp.ne.s32.totalorder %s206, %s207
      %p219 = scmp.eq.s32.totalorder %s29, 1
      %p220 = por %p218, %p219
      %p222 = scmp.ne.s32.totalorder %s207, %s221
      %p223 = scmp.eq.s32.totalorder %s29, 0
      %p224 = por %p222, %p223
      %s226 = sadd.s32 %s225, 1
      %p229 = scmp.eq.s32.totalorder %s23, 1
      %p230 = scmp.ne.s32.totalorder %s225, %s227
      %p231 = scmp.eq.s32.totalorder %s23, 0
      %p232 = por %p230, %p231
      %p233 = scmp.ne.s32.totalorder %s225, %s227
      %p234 = scmp.eq.s32.totalorder %s28, 1
      %p235 = por %p233, %p234
      %p236 = scmp.ne.s32.totalorder %s227, %s228
      %p237 = scmp.eq.s32.totalorder %s28, 0
      %p238 = por %p236, %p237
      %p239 = scmp.ne.s32.totalorder %s227, %s228
      %p240 = scmp.eq.s32.totalorder %s29, 1
      %p241 = por %p239, %p240
      %p243 = scmp.ne.s32.totalorder %s228, %s242
      %p244 = scmp.eq.s32.totalorder %s29, 0
      %p245 = por %p243, %p244
      %s247 = sadd.s32 %s246, 1
      %p250 = scmp.eq.s32.totalorder %s23, 1
      %p251 = scmp.ne.s32.totalorder %s246, %s248
      %p252 = scmp.eq.s32.totalorder %s23, 0
      %p253 = por %p251, %p252
      %p254 = scmp.ne.s32.totalorder %s246, %s248
      %p255 = scmp.eq.s32.totalorder %s28, 1
      %p256 = por %p254, %p255
      %p257 = scmp.ne.s32.totalorder %s248, %s249
      %p258 = scmp.eq.s32.totalorder %s28, 0
      %p259 = por %p257, %p258
      %p260 = scmp.ne.s32.totalorder %s248, %s249
      %p261 = scmp.eq.s32.totalorder %s29, 1
      %p262 = por %p260, %p261
      %p264 = scmp.ne.s32.totalorder %s249, %s263
      %p265 = scmp.eq.s32.totalorder %s29, 0
      %p266 = por %p264, %p265
      %s268 = sadd.s32 %s267, 1
      %p271 = scmp.eq.s32.totalorder %s23, 1
      %p272 = scmp.ne.s32.totalorder %s267, %s269
      %p273 = scmp.eq.s32.totalorder %s23, 0
      %p274 = por %p272, %p273
      %p275 = scmp.ne.s32.totalorder %s267, %s269
      %p276 = scmp.eq.s32.totalorder %s28, 1
      %p277 = por %p275, %p276
      %p278 = scmp.ne.s32.totalorder %s269, %s270
      %p279 = scmp.eq.s32.totalorder %s28, 0
      %p280 = por %p278, %p279
      %p281 = scmp.ne.s32.totalorder %s269, %s270
      %p282 = scmp.eq.s32.totalorder %s29, 1
      %p283 = por %p281, %p282
      %p285 = scmp.ne.s32.totalorder %s270, %s284
      %p286 = scmp.eq.s32.totalorder %s29, 0
      %p287 = por %p285, %p286
      %s289 = sadd.s32 %s288, 1
      %p292 = scmp.eq.s32.totalorder %s23, 1
      %p293 = scmp.ne.s32.totalorder %s288, %s290
      %p294 = scmp.eq.s32.totalorder %s23, 0
      %p295 = por %p293, %p294
      %p296 = scmp.ne.s32.totalorder %s288, %s290
      %p297 = scmp.eq.s32.totalorder %s28, 1
      %p298 = por %p296, %p297
      %p299 = scmp.ne.s32.totalorder %s290, %s291
      %p300 = scmp.eq.s32.totalorder %s28, 0
      %p301 = por %p299, %p300
      %p302 = scmp.ne.s32.totalorder %s290, %s291
      %p303 = scmp.eq.s32.totalorder %s29, 1
      %p304 = por %p302, %p303
      %p306 = scmp.ne.s32.totalorder %s291, %s305
      %p307 = scmp.eq.s32.totalorder %s29, 0
      %p308 = por %p306, %p307
      %s310 = sadd.s32 %s309, 1
      %p313 = scmp.eq.s32.totalorder %s23, 1
      %p314 = scmp.ne.s32.totalorder %s309, %s311
      %p315 = scmp.eq.s32.totalorder %s23, 0
      %p316 = por %p314, %p315
      %p317 = scmp.ne.s32.totalorder %s309, %s311
      %p318 = scmp.eq.s32.totalorder %s28, 1
      %p319 = por %p317, %p318
      %p320 = scmp.ne.s32.totalorder %s311, %s312
      %p321 = scmp.eq.s32.totalorder %s28, 0
      %p322 = por %p320, %p321
      %p323 = scmp.ne.s32.totalorder %s311, %s312
      %p324 = scmp.eq.s32.totalorder %s29, 1
      %p325 = por %p323, %p324
      %p327 = scmp.ne.s32.totalorder %s312, %s326
      %p328 = scmp.eq.s32.totalorder %s29, 0
      %p329 = por %p327, %p328
      %s330 = ssub.s32 %s23, %s30
      %p331 = scmp.eq.s32.totalorder %s330, 0
      %s333 = sadd.s32 %s332, 1
      %s334 = scalar_select %p331, %s332, %s333
      %p337 = pneg %p331
      %p338 = scmp.eq.s32.totalorder %s23, 1
      %p339 = por %p337, %p338
      %p340 = scmp.ne.s32.totalorder %s332, %s335
      %p341 = scmp.eq.s32.totalorder %s23, 0
      %p342 = por %p340, %p341
      %p343 = scmp.ne.s32.totalorder %s332, %s335
      %p344 = scmp.eq.s32.totalorder %s28, 1
      %p345 = por %p343, %p344
      %p346 = scmp.ne.s32.totalorder %s335, %s336
      %p347 = scmp.eq.s32.totalorder %s28, 0
      %p348 = por %p346, %p347
      %p349 = scmp.ne.s32.totalorder %s335, %s336
      %p350 = scmp.eq.s32.totalorder %s29, 1
      %p351 = por %p349, %p350
      %p353 = scmp.ne.s32.totalorder %s336, %s352
      %p354 = scmp.eq.s32.totalorder %s29, 0
      %p355 = por %p353, %p354
      %p356 = scmp.le.s32.totalorder 1, %s23
      %p357 = scmp.lt.s32.totalorder %s23, 3
      %p358 = pnand %p356, %p357
      %p359 = pneg %p358
      // Predicated region
      $region9: #{tpu_custom_call.1} parent=5 // pred_check
        _
      $region10: #{tpu_custom_call.1} parent=5 // pred_check_branch
        %361 = sbr.rel (%p358) target = $region12
      $region11: #{tpu_custom_call.1} parent=5 // pred_region
        %s362 = ssub.s32 %s23, 1
        // Predicated region
        $region13: #{tpu_custom_call.1} parent=11 // pred_check
          %p363 = pneg %p70
        $region14: #{tpu_custom_call.1} parent=11 // pred_check_branch
          %365 = sbr.rel (%p363) target = $region16
        $region15: #{tpu_custom_call.1} parent=11 // pred_region
          _
        $region16: #{tpu_custom_call.1} parent=11 // pred_fallthru
          _
        // Predicated region
        $region17: #{tpu_custom_call.1} parent=11 // pred_check
          %p366 = pneg %p91
        $region18: #{tpu_custom_call.1} parent=11 // pred_check_branch
          %368 = sbr.rel (%p366) target = $region20
        $region19: #{tpu_custom_call.1} parent=11 // pred_region
          _
        $region20: #{tpu_custom_call.1} parent=11 // pred_fallthru
          _
        // Predicated region
        $region21: #{tpu_custom_call.1} parent=11 // pred_check
          %p369 = pneg %p112
        $region22: #{tpu_custom_call.1} parent=11 // pred_check_branch
          %371 = sbr.rel (%p369) target = $region24
        $region23: #{tpu_custom_call.1} parent=11 // pred_region
          _
        $region24: #{tpu_custom_call.1} parent=11 // pred_fallthru
          _
        // Predicated region
        $region25: #{tpu_custom_call.1} parent=11 // pred_check
          %p372 = pneg %p133
        $region26: #{tpu_custom_call.1} parent=11 // pred_check_branch
          %374 = sbr.rel (%p372) target = $region28
        $region27: #{tpu_custom_call.1} parent=11 // pred_region
          _
        $region28: #{tpu_custom_call.1} parent=11 // pred_fallthru
          _
        // Predicated region
        $region29: #{tpu_custom_call.1} parent=11 // pred_check
          %p375 = pneg %p154
        $region30: #{tpu_custom_call.1} parent=11 // pred_check_branch
          %377 = sbr.rel (%p375) target = $region32
        $region31: #{tpu_custom_call.1} parent=11 // pred_region
          _
        $region32: #{tpu_custom_call.1} parent=11 // pred_fallthru
          _
        // Predicated region
        $region33: #{tpu_custom_call.1} parent=11 // pred_check
          %p378 = pneg %p175
        $region34: #{tpu_custom_call.1} parent=11 // pred_check_branch
          %380 = sbr.rel (%p378) target = $region36
        $region35: #{tpu_custom_call.1} parent=11 // pred_region
          _
        $region36: #{tpu_custom_call.1} parent=11 // pred_fallthru
          _
        // Predicated region
        $region37: #{tpu_custom_call.1} parent=11 // pred_check
          %p381 = pneg %p196
        $region38: #{tpu_custom_call.1} parent=11 // pred_check_branch
          %383 = sbr.rel (%p381) target = $region40
        $region39: #{tpu_custom_call.1} parent=11 // pred_region
          _
        $region40: #{tpu_custom_call.1} parent=11 // pred_fallthru
          _
        // Predicated region
        $region41: #{tpu_custom_call.1} parent=11 // pred_check
          %p384 = pneg %p217
        $region42: #{tpu_custom_call.1} parent=11 // pred_check_branch
          %386 = sbr.rel (%p384) target = $region44
        $region43: #{tpu_custom_call.1} parent=11 // pred_region
          _
        $region44: #{tpu_custom_call.1} parent=11 // pred_fallthru
          _
        // Predicated region
        $region45: #{tpu_custom_call.1} parent=11 // pred_check
          %p387 = pneg %p238
        $region46: #{tpu_custom_call.1} parent=11 // pred_check_branch
          %389 = sbr.rel (%p387) target = $region48
        $region47: #{tpu_custom_call.1} parent=11 // pred_region
          _
        $region48: #{tpu_custom_call.1} parent=11 // pred_fallthru
          _
        // Predicated region
        $region49: #{tpu_custom_call.1} parent=11 // pred_check
          %p390 = pneg %p259
        $region50: #{tpu_custom_call.1} parent=11 // pred_check_branch
          %392 = sbr.rel (%p390) target = $region52
        $region51: #{tpu_custom_call.1} parent=11 // pred_region
          _
        $region52: #{tpu_custom_call.1} parent=11 // pred_fallthru
          _
        // Predicated region
        $region53: #{tpu_custom_call.1} parent=11 // pred_check
          %p393 = pneg %p280
        $region54: #{tpu_custom_call.1} parent=11 // pred_check_branch
          %395 = sbr.rel (%p393) target = $region56
        $region55: #{tpu_custom_call.1} parent=11 // pred_region
          _
        $region56: #{tpu_custom_call.1} parent=11 // pred_fallthru
          _
        // Predicated region
        $region57: #{tpu_custom_call.1} parent=11 // pred_check
          %p396 = pneg %p301
        $region58: #{tpu_custom_call.1} parent=11 // pred_check_branch
          %398 = sbr.rel (%p396) target = $region60
        $region59: #{tpu_custom_call.1} parent=11 // pred_region
          _
        $region60: #{tpu_custom_call.1} parent=11 // pred_fallthru
          _
        // Predicated region
        $region61: #{tpu_custom_call.1} parent=11 // pred_check
          %p399 = pneg %p322
        $region62: #{tpu_custom_call.1} parent=11 // pred_check_branch
          %401 = sbr.rel (%p399) target = $region64
        $region63: #{tpu_custom_call.1} parent=11 // pred_region
          _
        $region64: #{tpu_custom_call.1} parent=11 // pred_fallthru
          _
      $region12: #{tpu_custom_call.1} parent=5 // pred_fallthru
        _
      %p402 = scmp.lt.s32.totalorder %s23, 2
      // Predicated region
      $region65: #{tpu_custom_call.1} parent=5 // pred_check
        %p403 = pneg %p402
      $region66: #{tpu_custom_call.1} parent=5 // pred_check_branch
        %405 = sbr.rel (%p403) target = $region68
      $region67: #{tpu_custom_call.1} parent=5 // pred_region
        // Predicated region
        $region69: #{tpu_custom_call.1} parent=67 // pred_check
          %p406 = pneg %p43
        $region70: #{tpu_custom_call.1} parent=67 // pred_check_branch
          %408 = sbr.rel (%p406) target = $region72
        $region71: #{tpu_custom_call.1} parent=67 // pred_region
          %p409 = scmp.lt.s32.totalorder %s23, 1
          %s410 = scalar_select %p409, %s23, 1
          %s411 = smul.addr %s410, 2
          %s412 = smul.addr %s411, 4
          %s413 = scalar_lea.vmem %s0, %s412
        $region72: #{tpu_custom_call.1} parent=67 // pred_fallthru
          _
      $region68: #{tpu_custom_call.1} parent=5 // pred_fallthru
        _
      %p414 = scmp.le.s32.totalorder 1, %s23
      %p415 = scmp.lt.s32.totalorder %s23, 3
      %p416 = pnand %p414, %p415
      %p417 = pneg %p416
      // Predicated region
      $region73: #{tpu_custom_call.1} parent=5 // pred_check
        _
      $region74: #{tpu_custom_call.1} parent=5 // pred_check_branch
        %419 = sbr.rel (%p416) target = $region76
      $region75: #{tpu_custom_call.1} parent=5 // pred_region
        %s420 = ssub.s32 %s23, 1
        %p421 = scmp.lt.s32.totalorder %s28, 1
        %s422 = scalar_select %p421, %s28, 1
        %s423 = smul.addr %s422, 2
        %s424 = smul.addr %s423, 4
        %s425 = scalar_lea.vmem %s0, %s424
        %p426 = pneg %p49
        %p427 = pneg %p46
        %p428 = pneg %p70
        %p429 = pneg %p67
        %p430 = pneg %p91
        %p431 = pneg %p88
        %p432 = pneg %p112
        %p433 = pneg %p109
        %p434 = pneg %p133
        %p435 = pneg %p130
        %p436 = pneg %p154
        %p437 = pneg %p151
        %p438 = pneg %p175
        %p439 = pneg %p172
        %p440 = pneg %p196
        %p441 = pneg %p193
        %p442 = pneg %p217
        %p443 = pneg %p214
        %p444 = pneg %p238
        %p445 = pneg %p235
        %p446 = pneg %p259
        %p447 = pneg %p256
        %p448 = pneg %p280
        %p449 = pneg %p277
        %p450 = pneg %p301
        %p451 = pneg %p298
        %p452 = pneg %p322
        %p453 = pneg %p319
        %p454 = pneg %p348
        %p455 = pneg %p345
        %s456 = sand.u32 %s335, 1
        %s457 = scalar_lea.sflag [#allocation5], %s456
        %s458 = sand.u32 %s335, 1
        %s459 = smul.addr %s458, 64
        %s460 = scalar_lea.vmem [#allocation4], %s459
        %p461 = scmp.lt.s32.totalorder %s28, 1
        %s462 = scalar_select %p461, %s28, 1
        %s463 = smul.addr %s462, 2
        %s464 = smul.addr %s463, 4
        %s465 = scalar_lea.vmem %s0, %s464
        %466 = vst [vmem:[#allocation2] sm:$0xff] 0.0
        %467 = vst [vmem:[#allocation2 + $0x18] sm:$0xff] 0.0
        %s468 = scalar_lea.vmem [#allocation2], 32
        %469 = vst [vmem:[%s468] sm:$0xff] 0.0
        %470 = vst [vmem:[%s468 + $0x18] sm:$0xff] 0.0
        %s471 = scalar_lea.vmem [#allocation2], 64
        %472 = vst [vmem:[%s471] sm:$0xff] 0.0
        %473 = vst [vmem:[%s471 + $0x18] sm:$0xff] 0.0
        %v474 = vlaneseq
        %v475 = vand.u32 %v474, 127
        %v476 = vadd.s32 %v475, 128
        %vm477 = vcmp.lt.s32.totalorder %v475, 0
        %v478 = vsub.s32 0, %v475
        %v479 = vsel %vm477, %v478, %v475
        %v480 = vshrl.u32 %v479, 4
        %v481 = vand.u32 %v479, 15
        %v482 = vsub.s32 0, %v481
        %v483 = vsel %vm477, %v482, %v481
        %vm484 = vcmp.lt.s32.totalorder %v476, 0
        %v485 = vsub.s32 0, %v476
        %v486 = vsel %vm484, %v485, %v476
        %v487 = vshrl.u32 %v486, 4
        %v488 = vand.u32 %v486, 15
        %v489 = vsub.s32 0, %v488
        %v490 = vsel %vm484, %v489, %v488
        %vm491 = vcmp.ne.s32.totalorder %v483, 0
        %vm492 = vcmp.ne.s32.totalorder %v490, 0
        %vm493 = vcmp.lt.s32.totalorder %v483, 0
        %vm494 = vcmp.lt.s32.totalorder %v490, 0
        %vm495 = vmand %vm493, %vm491
        %vm496 = vmand %vm494, %vm492
        %v497 = vadd.s32 %v483, 16
        %v498 = vadd.s32 %v490, 16
        %v499 = vsel %vm495, %v497, %v483
        %v500 = vsel %vm496, %v498, %v490
        %v501 = vld [vmem:[%s465] sm:$0xff]
        %v502 = vld [vmem:[%s1] sm:$0xff]
        %v503 = vld [vmem:[%s1 + $0x8] sm:$0xff]
        %v504 = vld [vmem:[%s1 + $0x10] sm:$0xff]
        %v505 = vld [vmem:[%s1 + $0x18] sm:$0xff]
        %v506 = vld [vmem:[%s1 + $0x20] sm:$0xff]
        %v508 = vcombine.high %v501, %v501
        %vm509 = vcmask 31744
        %v511 = vsel %vm509, %v502, 0
        %v514 = vsel %vm509, %v503, 0
        %v517 = vsel %vm509, %v504, 0
        %v520 = vsel %vm509, %v505, 0
        %v523 = vsel %vm509, %v506, 0
        %vm525 = vcmask 1043456
        %v526 = vsel %vm525, %v501, 0
        %v528 = vsel %vm525, %v508, 0
        %530 = vmatprep.subr.mxu0 %v528
        %531 = vmatpush1.msra.mxu0 %v526
        %532 = vmatprep.subr.mxu0 0.0
        %533 = vmatpush1.msra.mxu0 0.0
        %534 = vmatprep.subr.mxu0 0.0
        %535 = vmatpush1.msra.mxu0 0.0
        %536 = vmatprep.subr.mxu0 0.0
        %537 = vmatpush1.msra.mxu0 0.0
        %538 = vmatprep.subr.mxu0 0.0
        %539 = vmatpush1.msra.mxu0 0.0
        %540 = vmatprep.subr.mxu0 0.0
        %541 = vmatpush1.msra.mxu0 0.0
        %542 = vmatprep.subr.mxu0 0.0
        %543 = vmatpush1.msra.mxu0 0.0
        %544 = vmatprep.subr.mxu0 0.0
        %545 = vmatpush1.msra.mxu0 0.0
        %546 = vmatprep.subr.mxu0 0.0
        %547 = vmatpush1.msra.mxu0 0.0
        %548 = vmatprep.subr.mxu0 0.0
        %549 = vmatpush1.msra.mxu0 0.0
        %550 = vmatprep.subr.mxu0 0.0
        %551 = vmatpush1.msra.mxu0 0.0
        %552 = vmatprep.subr.mxu0 0.0
        %553 = vmatpush1.msra.mxu0 0.0
        %554 = vmatprep.subr.mxu0 0.0
        %555 = vmatpush1.msra.mxu0 0.0
        %556 = vmatprep.subr.mxu0 0.0
        %557 = vmatpush1.msra.mxu0 0.0
        %558 = vmatprep.subr.mxu0 0.0
        %559 = vmatpush1.msra.mxu0 0.0
        %560 = vmatprep.subr.mxu0 0.0
        %561 = vmatpush1.msra.mxu0 0.0
        %562 = vmatprep.subr.mxu0 0.0
        %563 = vmatpush1.msra.mxu0 0.0
        %564 = vmatprep.subr.mxu0 0.0
        %565 = vmatpush1.msra.mxu0 0.0
        %566 = vmatprep.subr.mxu0 0.0
        %567 = vmatpush1.msra.mxu0 0.0
        %568 = vmatprep.subr.mxu0 0.0
        %569 = vmatpush1.msra.mxu0 0.0
        %570 = vmatprep.subr.mxu0 0.0
        %571 = vmatpush1.msra.mxu0 0.0
        %572 = vmatprep.subr.mxu0 0.0
        %573 = vmatpush1.msra.mxu0 0.0
        %574 = vmatprep.subr.mxu0 0.0
        %575 = vmatpush1.msra.mxu0 0.0
        %576 = vmatprep.subr.mxu0 0.0
        %577 = vmatpush1.msra.mxu0 0.0
        %578 = vmatprep.subr.mxu0 0.0
        %579 = vmatpush1.msra.mxu0 0.0
        %580 = vmatprep.subr.mxu0 0.0
        %581 = vmatpush1.msra.mxu0 0.0
        %582 = vmatprep.subr.mxu0 0.0
        %583 = vmatpush1.msra.mxu0 0.0
        %584 = vmatprep.subr.mxu0 0.0
        %585 = vmatpush1.msra.mxu0 0.0
        %586 = vmatprep.subr.mxu0 0.0
        %587 = vmatpush1.msra.mxu0 0.0
        %588 = vmatprep.subr.mxu0 0.0
        %589 = vmatpush1.msra.mxu0 0.0
        %590 = vmatprep.subr.mxu0 0.0
        %591 = vmatpush1.msra.mxu0 0.0
        %592 = vmatprep.subr.mxu0 0.0
        %593 = vmatpush1.msra.mxu0 0.0
        %594 = vmatprep.mubr.f32.mxu0 0.0
        %595 = vmatmul.mubr.f32.gmra.mrb[0].mxu0 %v511
        %v596 = vpop.f32.mrb[0].mxu0
        %v597 = vadd.f32 0.0, %v596
        %v598 = vpop.f32.mrb[0].mxu0
        %v599 = vadd.f32 0.0, %v598
        %600 = vmatprep.mubr.f32.mxu0 0.0
        %601 = vmatmul.mubr.f32.gmra.mrb[0].mxu0 %v514
        %v602 = vpop.f32.mrb[0].mxu0
        %v603 = vadd.f32 0.0, %v602
        %v604 = vpop.f32.mrb[0].mxu0
        %v605 = vadd.f32 0.0, %v604
        %606 = vmatprep.mubr.f32.mxu0 0.0
        %607 = vmatmul.mubr.f32.gmra.mrb[0].mxu0 %v517
        %v608 = vpop.f32.mrb[0].mxu0
        %v609 = vadd.f32 0.0, %v608
        %v610 = vpop.f32.mrb[0].mxu0
        %v611 = vadd.f32 0.0, %v610
        %612 = vmatprep.mubr.f32.mxu0 0.0
        %613 = vmatmul.mubr.f32.gmra.mrb[0].mxu0 %v520
        %v614 = vpop.f32.mrb[0].mxu0
        %v615 = vadd.f32 0.0, %v614
        %v616 = vpop.f32.mrb[0].mxu0
        %v617 = vadd.f32 0.0, %v616
        %618 = vmatprep.mubr.f32.mxu0 0.0
        %619 = vmatmul.mubr.f32.gmra.mrb[0].mxu0 %v523
        %v620 = vpop.f32.mrb[0].mxu0
        %v621 = vadd.f32 0.0, %v620
        %v622 = vpop.f32.mrb[0].mxu0
        %v623 = vadd.f32 0.0, %v622
        %624 = vdwg.mxu0
        %v625 = vld [vmem:[%s2] sm:$0xff]
        %v626 = vld [vmem:[%s2 + $0x8] sm:$0xff]
        %v627 = vld [vmem:[%s2 + $0x10] sm:$0xff]
        %v628 = vld [vmem:[%s2 + $0x18] sm:$0xff]
        %v629 = vld [vmem:[%s2 + $0x20] sm:$0xff]
        %631 = vset.pattern.permute.xlu0 0
        %632 = vperm.xlu0 %631, %v625
        %v633 = vpop.permute.xlu0 %632
        %636 = vset.pattern.permute.xlu0 0
        %637 = vperm.xlu0 %636, %v626
        %v638 = vpop.permute.xlu0 %637
        %641 = vset.pattern.permute.xlu0 0
        %642 = vperm.xlu0 %641, %v627
        %v643 = vpop.permute.xlu0 %642
        %646 = vset.pattern.permute.xlu0 0
        %647 = vperm.xlu0 %646, %v628
        %v648 = vpop.permute.xlu0 %647
        %651 = vset.pattern.permute.xlu0 0
        %652 = vperm.xlu0 %651, %v629
        %v653 = vpop.permute.xlu0 %652
        %v655 = vmul.f32 %v597, %v633
        %v656 = vmul.f32 %v599, %v633
        %v657 = vmul.f32 %v603, %v638
        %v658 = vmul.f32 %v605, %v638
        %v659 = vmul.f32 %v609, %v643
        %v660 = vmul.f32 %v611, %v643
        %v661 = vmul.f32 %v615, %v648
        %v662 = vmul.f32 %v617, %v648
        %v663 = vmul.f32 %v621, %v653
        %v664 = vmul.f32 %v623, %v653
        %v665 = vld [vmem:[%s3] sm:$0xff]
        %v666 = vld [vmem:[%s3 + $0x8] sm:$0xff]
        %v667 = vld [vmem:[%s3 + $0x10] sm:$0xff]
        %v668 = vld [vmem:[%s3 + $0x18] sm:$0xff]
        %v669 = vld [vmem:[%s3 + $0x20] sm:$0xff]
        %671 = vset.pattern.permute.xlu0 0
        %672 = vperm.xlu0 %671, %v665
        %v673 = vpop.permute.xlu0 %672
        %676 = vset.pattern.permute.xlu0 0
        %677 = vperm.xlu0 %676, %v666
        %v678 = vpop.permute.xlu0 %677
        %681 = vset.pattern.permute.xlu0 0
        %682 = vperm.xlu0 %681, %v667
        %v683 = vpop.permute.xlu0 %682
        %686 = vset.pattern.permute.xlu0 0
        %687 = vperm.xlu0 %686, %v668
        %v688 = vpop.permute.xlu0 %687
        %691 = vset.pattern.permute.xlu0 0
        %692 = vperm.xlu0 %691, %v669
        %v693 = vpop.permute.xlu0 %692
        %v695 = vadd.f32 %v655, %v673
        %v696 = vadd.f32 %v656, %v673
        %v697 = vadd.f32 %v657, %v678
        %v698 = vadd.f32 %v658, %v678
        %v699 = vadd.f32 %v659, %v683
        %v700 = vadd.f32 %v660, %v683
        %v701 = vadd.f32 %v661, %v688
        %v702 = vadd.f32 %v662, %v688
        %v703 = vadd.f32 %v663, %v693
        %v704 = vadd.f32 %v664, %v693
        %v705 = vmax.f32 %v695, 0.0
        %v706 = vmax.f32 %v696, 0.0
        %vm707 = vcmp.eq.s32.totalorder %v499, 15
        %vm708 = vcmp.eq.s32.totalorder %v500, 15
        %v709 = vsel %vm707, 1, 0
        %v710 = vsel %vm708, 1, 0
        %vm711 = vcmp.eq.s32.totalorder %v709, 1
        %vm712 = vcmp.eq.s32.totalorder %v710, 1
        %v713 = vsel %vm711, 0.0, %v705
        %v714 = vsel %vm712, 0.0, %v706
        %vm715 = vcmp.eq.s32.totalorder %v499, 0
        %vm716 = vcmp.eq.s32.totalorder %v500, 0
        %v717 = vsel %vm715, 1, 0
        %v718 = vsel %vm716, 1, 0
        %vm719 = vcmp.eq.s32.totalorder %v717, 1
        %vm720 = vcmp.eq.s32.totalorder %v718, 1
        %v721 = vsel %vm719, 0.0, %v705
        %v722 = vsel %vm720, 0.0, %v706
        %723 = vst [vmem:[#allocation2 + $0x8] sm:$0xff] %v705
        %724 = vst [vmem:[#allocation2 + $0x10] sm:$0xff] %v706
        %725 = vst [vmem:[%s468 + $0x8] sm:$0xff] %v713
        %726 = vst [vmem:[%s468 + $0x10] sm:$0xff] %v714
        %727 = vst [vmem:[%s471 + $0x8] sm:$0xff] %v721
        %728 = vst [vmem:[%s471 + $0x10] sm:$0xff] %v722
        %v729 = vld [vmem:[%s468] sm:$0xff]
        %v730 = vld [vmem:[%s468 + $0x8] sm:$0xff]
        %v731 = vld [vmem:[%s468 + $0x10] sm:$0xff]
        %735 = vrot.lane.b32.xlu0 %v729, 17
        %v736 = vpop.permute.xlu0 %735
        %737 = vrot.lane.b32.xlu0 %v730, 17
        %v738 = vpop.permute.xlu0 %737
        %739 = vrot.lane.b32.xlu0 %v731, 17
        %v740 = vpop.permute.xlu0 %739
        %vm741 = vcmask 138240
        %v742 = vsel %vm741, %v736, %v738
        %v743 = vsel %vm741, %v738, %v740
        %746 = vst [vmem:[#allocation3] sm:$0xff] %v742
        %747 = vst [vmem:[#allocation3 + $0x8] sm:$0xff] %v743
        %v748 = vld [vmem:[#allocation2] sm:$0xff]
        %v749 = vld [vmem:[#allocation2 + $0x8] sm:$0xff]
        %v750 = vld [vmem:[#allocation2 + $0x10] sm:$0xff]
        %754 = vrot.lane.b32.xlu0 %v748, 16
        %v755 = vpop.permute.xlu0 %754
        %756 = vrot.lane.b32.xlu0 %v749, 16
        %v757 = vpop.permute.xlu0 %756
        %758 = vrot.lane.b32.xlu0 %v750, 16
        %v759 = vpop.permute.xlu0 %758
        %vm760 = vcmask 130048
        %v761 = vsel %vm760, %v755, %v757
        %v762 = vsel %vm760, %v757, %v759
        %765 = vst [vmem:[#allocation3 + $0x10] sm:$0xff] %v761
        %766 = vst [vmem:[#allocation3 + $0x18] sm:$0xff] %v762
        %v767 = vld [vmem:[%s471] sm:$0xff]
        %v768 = vld [vmem:[%s471 + $0x8] sm:$0xff]
        %v769 = vld [vmem:[%s471 + $0x10] sm:$0xff]
        %773 = vrot.lane.b32.xlu0 %v767, 15
        %v774 = vpop.permute.xlu0 %773
        %775 = vrot.lane.b32.xlu0 %v768, 15
        %v776 = vpop.permute.xlu0 %775
        %777 = vrot.lane.b32.xlu0 %v769, 15
        %v778 = vpop.permute.xlu0 %777
        %vm779 = vcmask 121856
        %v780 = vsel %vm779, %v774, %v776
        %v781 = vsel %vm779, %v776, %v778
        %784 = vst [vmem:[#allocation3 + $0x20] sm:$0xff] %v780
        %785 = vst [vmem:[#allocation3 + $0x28] sm:$0xff] %v781
        %v786 = vld [vmem:[%s468] sm:$0xff]
        %v787 = vld [vmem:[%s468 + $0x8] sm:$0xff]
        %v788 = vld [vmem:[%s468 + $0x10] sm:$0xff]
        %792 = vrot.lane.b32.xlu0 %v786, 1
        %v793 = vpop.permute.xlu0 %792
        %794 = vrot.lane.b32.xlu0 %v787, 1
        %v795 = vpop.permute.xlu0 %794
        %796 = vrot.lane.b32.xlu0 %v788, 1
        %v797 = vpop.permute.xlu0 %796
        %vm798 = vcmask 7168
        %v799 = vsel %vm798, %v793, %v795
        %v800 = vsel %vm798, %v795, %v797
        %803 = vst [vmem:[#allocation3 + $0x30] sm:$0xff] %v799
        %804 = vst [vmem:[#allocation3 + $0x38] sm:$0xff] %v800
        %v805 = vld [vmem:[#allocation2 + $0x8] sm:$0xff]
        %v806 = vld [vmem:[#allocation2 + $0x10] sm:$0xff]
        %807 = vst [vmem:[#allocation3 + $0x40] sm:$0xff] %v805
        %808 = vst [vmem:[#allocation3 + $0x48] sm:$0xff] %v806
        %v809 = vld [vmem:[%s471 + $0x8] sm:$0xff]
        %v810 = vld [vmem:[%s471 + $0x10] sm:$0xff]
        %v811 = vld [vmem:[%s471 + $0x18] sm:$0xff]
        %815 = vrot.lane.b32.xlu0 %v809, 127
        %v816 = vpop.permute.xlu0 %815
        %817 = vrot.lane.b32.xlu0 %v810, 127
        %v818 = vpop.permute.xlu0 %817
        %819 = vrot.lane.b32.xlu0 %v811, 127
        %v820 = vpop.permute.xlu0 %819
        %vm821 = vcmask 1039360
        %v822 = vsel %vm821, %v816, %v818
        %v823 = vsel %vm821, %v818, %v820
        %826 = vst [vmem:[#allocation3 + $0x50] sm:$0xff] %v822
        %827 = vst [vmem:[#allocation3 + $0x58] sm:$0xff] %v823
        %v828 = vld [vmem:[%s468 + $0x8] sm:$0xff]
        %v829 = vld [vmem:[%s468 + $0x10] sm:$0xff]
        %v830 = vld [vmem:[%s468 + $0x18] sm:$0xff]
        %834 = vrot.lane.b32.xlu0 %v828, 113
        %v835 = vpop.permute.xlu0 %834
        %836 = vrot.lane.b32.xlu0 %v829, 113
        %v837 = vpop.permute.xlu0 %836
        %838 = vrot.lane.b32.xlu0 %v830, 113
        %v839 = vpop.permute.xlu0 %838
        %vm840 = vcmask 924672
        %v841 = vsel %vm840, %v835, %v837
        %v842 = vsel %vm840, %v837, %v839
        %845 = vst [vmem:[#allocation3 + $0x60] sm:$0xff] %v841
        %846 = vst [vmem:[#allocation3 + $0x68] sm:$0xff] %v842
        %v847 = vld [vmem:[#allocation2 + $0x8] sm:$0xff]
        %v848 = vld [vmem:[#allocation2 + $0x10] sm:$0xff]
        %v849 = vld [vmem:[#allocation2 + $0x18] sm:$0xff]
        %853 = vrot.lane.b32.xlu0 %v847, 112
        %v854 = vpop.permute.xlu0 %853
        %855 = vrot.lane.b32.xlu0 %v848, 112
        %v856 = vpop.permute.xlu0 %855
        %857 = vrot.lane.b32.xlu0 %v849, 112
        %v858 = vpop.permute.xlu0 %857
        %vm859 = vcmask 916480
        %v860 = vsel %vm859, %v854, %v856
        %v861 = vsel %vm859, %v856, %v858
        %864 = vst [vmem:[#allocation3 + $0x70] sm:$0xff] %v860
        %865 = vst [vmem:[#allocation3 + $0x78] sm:$0xff] %v861
        %v866 = vld [vmem:[%s471 + $0x8] sm:$0xff]
        %v867 = vld [vmem:[%s471 + $0x10] sm:$0xff]
        %v868 = vld [vmem:[%s471 + $0x18] sm:$0xff]
        %872 = vrot.lane.b32.xlu0 %v866, 111
        %v873 = vpop.permute.xlu0 %872
        %874 = vrot.lane.b32.xlu0 %v867, 111
        %v875 = vpop.permute.xlu0 %874
        %876 = vrot.lane.b32.xlu0 %v868, 111
        %v877 = vpop.permute.xlu0 %876
        %vm878 = vcmask 908288
        %v879 = vsel %vm878, %v873, %v875
        %v880 = vsel %vm878, %v875, %v877
        %883 = vst [vmem:[#allocation3 + $0x80] sm:$0xff] %v879
        %884 = vst [vmem:[#allocation3 + $0x88] sm:$0xff] %v880
        %v885 = vld [vmem:[%s4] sm:$0xff]
        %v886 = vld [vmem:[#allocation3] sm:$0xff]
        %v887 = vld [vmem:[#allocation3 + $0x8] sm:$0xff]
        %v888 = vld [vmem:[#allocation3 + $0x10] sm:$0xff]
        %v889 = vld [vmem:[#allocation3 + $0x18] sm:$0xff]
        %v890 = vld [vmem:[#allocation3 + $0x20] sm:$0xff]
        %v891 = vld [vmem:[#allocation3 + $0x28] sm:$0xff]
        %v892 = vld [vmem:[#allocation3 + $0x30] sm:$0xff]
        %v893 = vld [vmem:[#allocation3 + $0x38] sm:$0xff]
        %v894 = vld [vmem:[#allocation3 + $0x40] sm:$0xff]
        %v895 = vld [vmem:[#allocation3 + $0x48] sm:$0xff]
        %v896 = vld [vmem:[#allocation3 + $0x50] sm:$0xff]
        %v897 = vld [vmem:[#allocation3 + $0x58] sm:$0xff]
        %v898 = vld [vmem:[#allocation3 + $0x60] sm:$0xff]
        %v899 = vld [vmem:[#allocation3 + $0x68] sm:$0xff]
        %v900 = vld [vmem:[#allocation3 + $0x70] sm:$0xff]
        %v901 = vld [vmem:[#allocation3 + $0x78] sm:$0xff]
        %v902 = vld [vmem:[#allocation3 + $0x80] sm:$0xff]
        %v903 = vld [vmem:[#allocation3 + $0x88] sm:$0xff]
        %vm904 = vcmask 588800
        %v906 = vsel %vm904, %v885, 0
        %908 = vmatprep.subr.mxu0 %v887
        %909 = vmatpush1.msra.mxu0 %v886
        %910 = vmatprep.subr.mxu0 %v889
        %911 = vmatpush1.msra.mxu0 %v888
        %912 = vmatprep.subr.mxu0 %v891
        %913 = vmatpush1.msra.mxu0 %v890
        %914 = vmatprep.subr.mxu0 %v893
        %915 = vmatpush1.msra.mxu0 %v892
        %916 = vmatprep.subr.mxu0 %v895
        %917 = vmatpush1.msra.mxu0 %v894
        %918 = vmatprep.subr.mxu0 %v897
        %919 = vmatpush1.msra.mxu0 %v896
        %920 = vmatprep.subr.mxu0 %v899
        %921 = vmatpush1.msra.mxu0 %v898
        %922 = vmatprep.subr.mxu0 %v901
        %923 = vmatpush1.msra.mxu0 %v900
        %924 = vmatprep.subr.mxu0 %v903
        %925 = vmatpush1.msra.mxu0 %v902
        %926 = vmatprep.subr.mxu0 0.0
        %927 = vmatpush1.msra.mxu0 0.0
        %928 = vmatprep.subr.mxu0 0.0
        %929 = vmatpush1.msra.mxu0 0.0
        %930 = vmatprep.subr.mxu0 0.0
        %931 = vmatpush1.msra.mxu0 0.0
        %932 = vmatprep.subr.mxu0 0.0
        %933 = vmatpush1.msra.mxu0 0.0
        %934 = vmatprep.subr.mxu0 0.0
        %935 = vmatpush1.msra.mxu0 0.0
        %936 = vmatprep.subr.mxu0 0.0
        %937 = vmatpush1.msra.mxu0 0.0
        %938 = vmatprep.subr.mxu0 0.0
        %939 = vmatpush1.msra.mxu0 0.0
        %940 = vmatprep.subr.mxu0 0.0
        %941 = vmatpush1.msra.mxu0 0.0
        %942 = vmatprep.subr.mxu0 0.0
        %943 = vmatpush1.msra.mxu0 0.0
        %944 = vmatprep.subr.mxu0 0.0
        %945 = vmatpush1.msra.mxu0 0.0
        %946 = vmatprep.subr.mxu0 0.0
        %947 = vmatpush1.msra.mxu0 0.0
        %948 = vmatprep.subr.mxu0 0.0
        %949 = vmatpush1.msra.mxu0 0.0
        %950 = vmatprep.subr.mxu0 0.0
        %951 = vmatpush1.msra.mxu0 0.0
        %952 = vmatprep.subr.mxu0 0.0
        %953 = vmatpush1.msra.mxu0 0.0
        %954 = vmatprep.subr.mxu0 0.0
        %955 = vmatpush1.msra.mxu0 0.0
        %956 = vmatprep.subr.mxu0 0.0
        %957 = vmatpush1.msra.mxu0 0.0
        %958 = vmatprep.subr.mxu0 0.0
        %959 = vmatpush1.msra.mxu0 0.0
        %960 = vmatprep.subr.mxu0 0.0
        %961 = vmatpush1.msra.mxu0 0.0
        %962 = vmatprep.subr.mxu0 0.0
        %963 = vmatpush1.msra.mxu0 0.0
        %964 = vmatprep.subr.mxu0 0.0
        %965 = vmatpush1.msra.mxu0 0.0
        %966 = vmatprep.subr.mxu0 0.0
        %967 = vmatpush1.msra.mxu0 0.0
        %968 = vmatprep.subr.mxu0 0.0
        %969 = vmatpush1.msra.mxu0 0.0
        %970 = vmatprep.subr.mxu0 0.0
        %971 = vmatpush1.msra.mxu0 0.0
        %972 = vmatprep.mubr.f32.mxu0 0.0
        %973 = vmatmul.mubr.f32.gmra.mrb[0].mxu0 %v906
        %v974 = vpop.f32.mrb[0].mxu0
        %v975 = vadd.f32 0.0, %v974
        %v976 = vpop.f32.mrb[0].mxu0
        %v977 = vadd.f32 0.0, %v976
        %978 = vdwg.mxu0
        %v979 = vld [vmem:[%s5] sm:$0xff]
        %981 = vset.pattern.permute.xlu0 0
        %982 = vperm.xlu0 %981, %v979
        %v983 = vpop.permute.xlu0 %982
        %v985 = vmul.f32 %v975, %v983
        %v986 = vmul.f32 %v977, %v983
        %v987 = vld [vmem:[%s6] sm:$0xff]
        %989 = vset.pattern.permute.xlu0 0
        %990 = vperm.xlu0 %989, %v987
        %v991 = vpop.permute.xlu0 %990
        %v993 = vadd.f32 %v985, %v991
        %v994 = vadd.f32 %v986, %v991
        %v995 = vmax.f32 %v993, 0.0
        %v996 = vmax.f32 %v994, 0.0
        %v997 = vld [vmem:[%s7] sm:$0xff]
        %v998 = vld [vmem:[%s7 + $0x8] sm:$0xff]
        %v999 = vld [vmem:[%s7 + $0x10] sm:$0xff]
        %v1000 = vld [vmem:[%s7 + $0x18] sm:$0xff]
        %vm1001 = vcmask 64512
        %v1003 = vsel %vm1001, %v997, 0
        %v1006 = vsel %vm1001, %v998, 0
        %v1009 = vsel %vm1001, %v999, 0
        %v1012 = vsel %vm1001, %v1000, 0
        %1014 = vmatprep.subr.mxu0 %v996
        %1015 = vmatpush1.msra.mxu0 %v995
        %1016 = vmatprep.subr.mxu0 0.0
        %1017 = vmatpush1.msra.mxu0 0.0
        %1018 = vmatprep.subr.mxu0 0.0
        %1019 = vmatpush1.msra.mxu0 0.0
        %1020 = vmatprep.subr.mxu0 0.0
        %1021 = vmatpush1.msra.mxu0 0.0
        %1022 = vmatprep.subr.mxu0 0.0
        %1023 = vmatpush1.msra.mxu0 0.0
        %1024 = vmatprep.subr.mxu0 0.0
        %1025 = vmatpush1.msra.mxu0 0.0
        %1026 = vmatprep.subr.mxu0 0.0
        %1027 = vmatpush1.msra.mxu0 0.0
        %1028 = vmatprep.subr.mxu0 0.0
        %1029 = vmatpush1.msra.mxu0 0.0
        %1030 = vmatprep.subr.mxu0 0.0
        %1031 = vmatpush1.msra.mxu0 0.0
        %1032 = vmatprep.subr.mxu0 0.0
        %1033 = vmatpush1.msra.mxu0 0.0
        %1034 = vmatprep.subr.mxu0 0.0
        %1035 = vmatpush1.msra.mxu0 0.0
        %1036 = vmatprep.subr.mxu0 0.0
        %1037 = vmatpush1.msra.mxu0 0.0
        %1038 = vmatprep.subr.mxu0 0.0
        %1039 = vmatpush1.msra.mxu0 0.0
        %1040 = vmatprep.subr.mxu0 0.0
        %1041 = vmatpush1.msra.mxu0 0.0
        %1042 = vmatprep.subr.mxu0 0.0
        %1043 = vmatpush1.msra.mxu0 0.0
        %1044 = vmatprep.subr.mxu0 0.0
        %1045 = vmatpush1.msra.mxu0 0.0
        %1046 = vmatprep.subr.mxu0 0.0
        %1047 = vmatpush1.msra.mxu0 0.0
        %1048 = vmatprep.subr.mxu0 0.0
        %1049 = vmatpush1.msra.mxu0 0.0
        %1050 = vmatprep.subr.mxu0 0.0
        %1051 = vmatpush1.msra.mxu0 0.0
        %1052 = vmatprep.subr.mxu0 0.0
        %1053 = vmatpush1.msra.mxu0 0.0
        %1054 = vmatprep.subr.mxu0 0.0
        %1055 = vmatpush1.msra.mxu0 0.0
        %1056 = vmatprep.subr.mxu0 0.0
        %1057 = vmatpush1.msra.mxu0 0.0
        %1058 = vmatprep.subr.mxu0 0.0
        %1059 = vmatpush1.msra.mxu0 0.0
        %1060 = vmatprep.subr.mxu0 0.0
        %1061 = vmatpush1.msra.mxu0 0.0
        %1062 = vmatprep.subr.mxu0 0.0
        %1063 = vmatpush1.msra.mxu0 0.0
        %1064 = vmatprep.subr.mxu0 0.0
        %1065 = vmatpush1.msra.mxu0 0.0
        %1066 = vmatprep.subr.mxu0 0.0
        %1067 = vmatpush1.msra.mxu0 0.0
        %1068 = vmatprep.subr.mxu0 0.0
        %1069 = vmatpush1.msra.mxu0 0.0
        %1070 = vmatprep.subr.mxu0 0.0
        %1071 = vmatpush1.msra.mxu0 0.0
        %1072 = vmatprep.subr.mxu0 0.0
        %1073 = vmatpush1.msra.mxu0 0.0
        %1074 = vmatprep.subr.mxu0 0.0
        %1075 = vmatpush1.msra.mxu0 0.0
        %1076 = vmatprep.subr.mxu0 0.0
        %1077 = vmatpush1.msra.mxu0 0.0
        %1078 = vmatprep.mubr.f32.mxu0 0.0
        %1079 = vmatmul.mubr.f32.gmra.mrb[0].mxu0 %v1003
        %v1080 = vpop.f32.mrb[0].mxu0
        %v1081 = vadd.f32 0.0, %v1080
        %v1082 = vpop.f32.mrb[0].mxu0
        %v1083 = vadd.f32 0.0, %v1082
        %1084 = vmatprep.mubr.f32.mxu0 0.0
        %1085 = vmatmul.mubr.f32.gmra.mrb[0].mxu0 %v1006
        %v1086 = vpop.f32.mrb[0].mxu0
        %v1087 = vadd.f32 0.0, %v1086
        %v1088 = vpop.f32.mrb[0].mxu0
        %v1089 = vadd.f32 0.0, %v1088
        %1090 = vmatprep.mubr.f32.mxu0 0.0
        %1091 = vmatmul.mubr.f32.gmra.mrb[0].mxu0 %v1009
        %v1092 = vpop.f32.mrb[0].mxu0
        %v1093 = vadd.f32 0.0, %v1092
        %v1094 = vpop.f32.mrb[0].mxu0
        %v1095 = vadd.f32 0.0, %v1094
        %1096 = vmatprep.mubr.f32.mxu0 0.0
        %1097 = vmatmul.mubr.f32.gmra.mrb[0].mxu0 %v1012
        %v1098 = vpop.f32.mrb[0].mxu0
        %v1099 = vadd.f32 0.0, %v1098
        %v1100 = vpop.f32.mrb[0].mxu0
        %v1101 = vadd.f32 0.0, %v1100
        %1102 = vdwg.mxu0
        %v1103 = vld [vmem:[%s8] sm:$0xff]
        %v1104 = vld [vmem:[%s8 + $0x8] sm:$0xff]
        %v1105 = vld [vmem:[%s8 + $0x10] sm:$0xff]
        %v1106 = vld [vmem:[%s8 + $0x18] sm:$0xff]
        %1108 = vset.pattern.permute.xlu0 0
        %1109 = vperm.xlu0 %1108, %v1103
        %v1110 = vpop.permute.xlu0 %1109
        %1113 = vset.pattern.permute.xlu0 0
        %1114 = vperm.xlu0 %1113, %v1104
        %v1115 = vpop.permute.xlu0 %1114
        %1118 = vset.pattern.permute.xlu0 0
        %1119 = vperm.xlu0 %1118, %v1105
        %v1120 = vpop.permute.xlu0 %1119
        %1123 = vset.pattern.permute.xlu0 0
        %1124 = vperm.xlu0 %1123, %v1106
        %v1125 = vpop.permute.xlu0 %1124
        %v1127 = vmul.f32 %v1081, %v1110
        %v1128 = vmul.f32 %v1083, %v1110
        %v1129 = vmul.f32 %v1087, %v1115
        %v1130 = vmul.f32 %v1089, %v1115
        %v1131 = vmul.f32 %v1093, %v1120
        %v1132 = vmul.f32 %v1095, %v1120
        %v1133 = vmul.f32 %v1099, %v1125
        %v1134 = vmul.f32 %v1101, %v1125
        %v1135 = vld [vmem:[%s9] sm:$0xff]
        %v1136 = vld [vmem:[%s9 + $0x8] sm:$0xff]
        %v1137 = vld [vmem:[%s9 + $0x10] sm:$0xff]
        %v1138 = vld [vmem:[%s9 + $0x18] sm:$0xff]
        %1140 = vset.pattern.permute.xlu0 0
        %1141 = vperm.xlu0 %1140, %v1135
        %v1142 = vpop.permute.xlu0 %1141
        %1145 = vset.pattern.permute.xlu0 0
        %1146 = vperm.xlu0 %1145, %v1136
        %v1147 = vpop.permute.xlu0 %1146
        %1150 = vset.pattern.permute.xlu0 0
        %1151 = vperm.xlu0 %1150, %v1137
        %v1152 = vpop.permute.xlu0 %1151
        %1155 = vset.pattern.permute.xlu0 0
        %1156 = vperm.xlu0 %1155, %v1138
        %v1157 = vpop.permute.xlu0 %1156
        %v1159 = vadd.f32 %v1127, %v1142
        %v1160 = vadd.f32 %v1128, %v1142
        %v1161 = vadd.f32 %v1129, %v1147
        %v1162 = vadd.f32 %v1130, %v1147
        %v1163 = vadd.f32 %v1131, %v1152
        %v1164 = vadd.f32 %v1132, %v1152
        %v1165 = vadd.f32 %v1133, %v1157
        %v1166 = vadd.f32 %v1134, %v1157
        %v1167 = vadd.f32 %v1159, %v1160
        %1168 = vadd.xlane.f32.xlu0 %v1167
        %v1169 = vpop.xlane.xlu0 %1168
        %v1170 = vadd.f32 %v1161, %v1162
        %1171 = vadd.xlane.f32.xlu0 %v1170
        %v1172 = vpop.xlane.xlu0 %1171
        %v1173 = vadd.f32 %v1163, %v1164
        %1174 = vadd.xlane.f32.xlu0 %v1173
        %v1175 = vpop.xlane.xlu0 %1174
        %v1176 = vadd.f32 %v1165, %v1166
        %1177 = vadd.xlane.f32.xlu0 %v1176
        %v1178 = vpop.xlane.xlu0 %1177
        %v1179 = vmul.f32 %v1169, 0.00390625
        %v1180 = vmul.f32 %v1172, 0.00390625
        %v1181 = vmul.f32 %v1175, 0.00390625
        %v1182 = vmul.f32 %v1178, 0.00390625
        %v1183 = vld [vmem:[%s10] sm:$0x3]
        %v1184 = vld [vmem:[%s11] sm:$0x3]
        %vm1185 = vcmask 261120
        %v1187 = vsel %vm1185, %v1183, 0
        %1189 = vmatprep.subr.mxu0 0.0
        %1190 = vmatpush1.msra.mxu0 %v1179
        %1191 = vmatprep.subr.mxu0 0.0
        %1192 = vmatpush1.msra.mxu0 %v1180
        %1193 = vmatprep.subr.mxu0 0.0
        %1194 = vmatpush1.msra.mxu0 %v1181
        %1195 = vmatprep.subr.mxu0 0.0
        %1196 = vmatpush1.msra.mxu0 %v1182
        %1197 = vmatprep.subr.mxu0 0.0
        %1198 = vmatpush1.msra.mxu0 0.0
        %1199 = vmatprep.subr.mxu0 0.0
        %1200 = vmatpush1.msra.mxu0 0.0
        %1201 = vmatprep.subr.mxu0 0.0
        %1202 = vmatpush1.msra.mxu0 0.0
        %1203 = vmatprep.subr.mxu0 0.0
        %1204 = vmatpush1.msra.mxu0 0.0
        %1205 = vmatprep.subr.mxu0 0.0
        %1206 = vmatpush1.msra.mxu0 0.0
        %1207 = vmatprep.subr.mxu0 0.0
        %1208 = vmatpush1.msra.mxu0 0.0
        %1209 = vmatprep.subr.mxu0 0.0
        %1210 = vmatpush1.msra.mxu0 0.0
        %1211 = vmatprep.subr.mxu0 0.0
        %1212 = vmatpush1.msra.mxu0 0.0
        %1213 = vmatprep.subr.mxu0 0.0
        %1214 = vmatpush1.msra.mxu0 0.0
        %1215 = vmatprep.subr.mxu0 0.0
        %1216 = vmatpush1.msra.mxu0 0.0
        %1217 = vmatprep.subr.mxu0 0.0
        %1218 = vmatpush1.msra.mxu0 0.0
        %1219 = vmatprep.subr.mxu0 0.0
        %1220 = vmatpush1.msra.mxu0 0.0
        %1221 = vmatprep.subr.mxu0 0.0
        %1222 = vmatpush1.msra.mxu0 0.0
        %1223 = vmatprep.subr.mxu0 0.0
        %1224 = vmatpush1.msra.mxu0 0.0
        %1225 = vmatprep.subr.mxu0 0.0
        %1226 = vmatpush1.msra.mxu0 0.0
        %1227 = vmatprep.subr.mxu0 0.0
        %1228 = vmatpush1.msra.mxu0 0.0
        %1229 = vmatprep.subr.mxu0 0.0
        %1230 = vmatpush1.msra.mxu0 0.0
        %1231 = vmatprep.subr.mxu0 0.0
        %1232 = vmatpush1.msra.mxu0 0.0
        %1233 = vmatprep.subr.mxu0 0.0
        %1234 = vmatpush1.msra.mxu0 0.0
        %1235 = vmatprep.subr.mxu0 0.0
        %1236 = vmatpush1.msra.mxu0 0.0
        %1237 = vmatprep.subr.mxu0 0.0
        %1238 = vmatpush1.msra.mxu0 0.0
        %1239 = vmatprep.subr.mxu0 0.0
        %1240 = vmatpush1.msra.mxu0 0.0
        %1241 = vmatprep.subr.mxu0 0.0
        %1242 = vmatpush1.msra.mxu0 0.0
        %1243 = vmatprep.subr.mxu0 0.0
        %1244 = vmatpush1.msra.mxu0 0.0
        %1245 = vmatprep.subr.mxu0 0.0
        %1246 = vmatpush1.msra.mxu0 0.0
        %1247 = vmatprep.subr.mxu0 0.0
        %1248 = vmatpush1.msra.mxu0 0.0
        %1249 = vmatprep.subr.mxu0 0.0
        %1250 = vmatpush1.msra.mxu0 0.0
        %1251 = vmatprep.subr.mxu0 0.0
        %1252 = vmatpush1.msra.mxu0 0.0
        %1253 = vmatprep.mubr.f32.mxu0 0.0
        %1254 = vmatmul.mubr.f32.gmra.mrb[0].mxu0 %v1187
        %v1255 = vpop.f32.mrb[0].mxu0
        %v1256 = vadd.f32 %v1184, %v1255
        %v1257 = vpop.f32.mrb[0].mxu0
        %1258 = vdwg.mxu0
        %v1259 = vmax.f32 %v1256, 0.0
        %v1260 = vld [vmem:[%s12] sm:$0xff]
        %v1261 = vld [vmem:[%s12 + $0x8] sm:$0xff]
        %v1262 = vld [vmem:[%s12 + $0x10] sm:$0xff]
        %v1263 = vld [vmem:[%s12 + $0x18] sm:$0xff]
        %v1264 = vld [vmem:[%s13] sm:$0xff]
        %v1265 = vld [vmem:[%s13 + $0x8] sm:$0xff]
        %v1266 = vld [vmem:[%s13 + $0x10] sm:$0xff]
        %v1267 = vld [vmem:[%s13 + $0x18] sm:$0xff]
        %vm1268 = vcmask 15360
        %v1270 = vsel %vm1268, %v1260, 0
        %v1273 = vsel %vm1268, %v1261, 0
        %v1276 = vsel %vm1268, %v1262, 0
        %v1279 = vsel %vm1268, %v1263, 0
        %vm1281 = vcmask 1041408
        %v1283 = vsel %vm1281, %v1259, 0
        %1285 = vmatprep.subr.mxu0 0.0
        %1286 = vmatpush1.msra.mxu0 %v1283
        %1287 = vmatprep.subr.mxu0 0.0
        %1288 = vmatpush1.msra.mxu0 0.0
        %1289 = vmatprep.subr.mxu0 0.0
        %1290 = vmatpush1.msra.mxu0 0.0
        %1291 = vmatprep.subr.mxu0 0.0
        %1292 = vmatpush1.msra.mxu0 0.0
        %1293 = vmatprep.subr.mxu0 0.0
        %1294 = vmatpush1.msra.mxu0 0.0
        %1295 = vmatprep.subr.mxu0 0.0
        %1296 = vmatpush1.msra.mxu0 0.0
        %1297 = vmatprep.subr.mxu0 0.0
        %1298 = vmatpush1.msra.mxu0 0.0
        %1299 = vmatprep.subr.mxu0 0.0
        %1300 = vmatpush1.msra.mxu0 0.0
        %1301 = vmatprep.subr.mxu0 0.0
        %1302 = vmatpush1.msra.mxu0 0.0
        %1303 = vmatprep.subr.mxu0 0.0
        %1304 = vmatpush1.msra.mxu0 0.0
        %1305 = vmatprep.subr.mxu0 0.0
        %1306 = vmatpush1.msra.mxu0 0.0
        %1307 = vmatprep.subr.mxu0 0.0
        %1308 = vmatpush1.msra.mxu0 0.0
        %1309 = vmatprep.subr.mxu0 0.0
        %1310 = vmatpush1.msra.mxu0 0.0
        %1311 = vmatprep.subr.mxu0 0.0
        %1312 = vmatpush1.msra.mxu0 0.0
        %1313 = vmatprep.subr.mxu0 0.0
        %1314 = vmatpush1.msra.mxu0 0.0
        %1315 = vmatprep.subr.mxu0 0.0
        %1316 = vmatpush1.msra.mxu0 0.0
        %1317 = vmatprep.subr.mxu0 0.0
        %1318 = vmatpush1.msra.mxu0 0.0
        %1319 = vmatprep.subr.mxu0 0.0
        %1320 = vmatpush1.msra.mxu0 0.0
        %1321 = vmatprep.subr.mxu0 0.0
        %1322 = vmatpush1.msra.mxu0 0.0
        %1323 = vmatprep.subr.mxu0 0.0
        %1324 = vmatpush1.msra.mxu0 0.0
        %1325 = vmatprep.subr.mxu0 0.0
        %1326 = vmatpush1.msra.mxu0 0.0
        %1327 = vmatprep.subr.mxu0 0.0
        %1328 = vmatpush1.msra.mxu0 0.0
        %1329 = vmatprep.subr.mxu0 0.0
        %1330 = vmatpush1.msra.mxu0 0.0
        %1331 = vmatprep.subr.mxu0 0.0
        %1332 = vmatpush1.msra.mxu0 0.0
        %1333 = vmatprep.subr.mxu0 0.0
        %1334 = vmatpush1.msra.mxu0 0.0
        %1335 = vmatprep.subr.mxu0 0.0
        %1336 = vmatpush1.msra.mxu0 0.0
        %1337 = vmatprep.subr.mxu0 0.0
        %1338 = vmatpush1.msra.mxu0 0.0
        %1339 = vmatprep.subr.mxu0 0.0
        %1340 = vmatpush1.msra.mxu0 0.0
        %1341 = vmatprep.subr.mxu0 0.0
        %1342 = vmatpush1.msra.mxu0 0.0
        %1343 = vmatprep.subr.mxu0 0.0
        %1344 = vmatpush1.msra.mxu0 0.0
        %1345 = vmatprep.subr.mxu0 0.0
        %1346 = vmatpush1.msra.mxu0 0.0
        %1347 = vmatprep.subr.mxu0 0.0
        %1348 = vmatpush1.msra.mxu0 0.0
        %1349 = vmatprep.mubr.f32.mxu0 0.0
        %1350 = vmatmul.mubr.f32.gmra.mrb[0].mxu0 %v1270
        %v1351 = vpop.f32.mrb[0].mxu0
        %v1352 = vadd.f32 %v1264, %v1351
        %v1353 = vpop.f32.mrb[0].mxu0
        %1354 = vmatprep.mubr.f32.mxu0 0.0
        %1355 = vmatmul.mubr.f32.gmra.mrb[0].mxu0 %v1273
        %v1356 = vpop.f32.mrb[0].mxu0
        %v1357 = vadd.f32 %v1265, %v1356
        %v1358 = vpop.f32.mrb[0].mxu0
        %1359 = vmatprep.mubr.f32.mxu0 0.0
        %1360 = vmatmul.mubr.f32.gmra.mrb[0].mxu0 %v1276
        %v1361 = vpop.f32.mrb[0].mxu0
        %v1362 = vadd.f32 %v1266, %v1361
        %v1363 = vpop.f32.mrb[0].mxu0
        %1364 = vmatprep.mubr.f32.mxu0 0.0
        %1365 = vmatmul.mubr.f32.gmra.mrb[0].mxu0 %v1279
        %v1366 = vpop.f32.mrb[0].mxu0
        %v1367 = vadd.f32 %v1267, %v1366
        %v1368 = vpop.f32.mrb[0].mxu0
        %1369 = vdwg.mxu0
        %v1370 = vxor.u32 %v1352, 2147483648
        %v1371 = vxor.u32 %v1357, 2147483648
        %v1372 = vxor.u32 %v1362, 2147483648
        %v1373 = vxor.u32 %v1367, 2147483648
        %v1374 = vmul.f32 %v1370, 1.442695
        %v1375 = vpow.pop %v1374
        %v1376 = vmul.f32 %v1371, 1.442695
        %v1377 = vpow.pop %v1376
        %v1378 = vmul.f32 %v1372, 1.442695
        %v1379 = vpow.pop %v1378
        %v1380 = vmul.f32 %v1373, 1.442695
        %v1381 = vpow.pop %v1380
        %v1382 = vadd.f32 %v1375, 1.0
        %v1383 = vadd.f32 %v1377, 1.0
        %v1384 = vadd.f32 %v1379, 1.0
        %v1385 = vadd.f32 %v1381, 1.0
        %v1386 = vrcp.pop %v1382
        %v1387 = vmul.f32 1.0, %v1386
        %v1388 = vrcp.pop %v1383
        %v1389 = vmul.f32 1.0, %v1388
        %v1390 = vrcp.pop %v1384
        %v1391 = vmul.f32 1.0, %v1390
        %v1392 = vrcp.pop %v1385
        %v1393 = vmul.f32 1.0, %v1392
        %1395 = vset.pattern.permute.xlu0 0
        %1396 = vperm.xlu0 %1395, %v1387
        %v1397 = vpop.permute.xlu0 %1396
        %1400 = vset.pattern.permute.xlu0 0
        %1401 = vperm.xlu0 %1400, %v1389
        %v1402 = vpop.permute.xlu0 %1401
        %1405 = vset.pattern.permute.xlu0 0
        %1406 = vperm.xlu0 %1405, %v1391
        %v1407 = vpop.permute.xlu0 %1406
        %1410 = vset.pattern.permute.xlu0 0
        %1411 = vperm.xlu0 %1410, %v1393
        %v1412 = vpop.permute.xlu0 %1411
        %v1414 = vmul.f32 %v1159, %v1397
        %v1415 = vmul.f32 %v1160, %v1397
        %v1416 = vmul.f32 %v1161, %v1402
        %v1417 = vmul.f32 %v1162, %v1402
        %v1418 = vmul.f32 %v1163, %v1407
        %v1419 = vmul.f32 %v1164, %v1407
        %v1420 = vmul.f32 %v1165, %v1412
        %v1421 = vmul.f32 %v1166, %v1412
        %v1422 = vadd.f32 %v1414, %v697
        %v1423 = vadd.f32 %v1415, %v698
        %v1424 = vadd.f32 %v1416, %v699
        %v1425 = vadd.f32 %v1417, %v700
        %v1426 = vadd.f32 %v1418, %v701
        %v1427 = vadd.f32 %v1419, %v702
        %v1428 = vadd.f32 %v1420, %v703
        %v1429 = vadd.f32 %v1421, %v704
        %v1430 = vmax.f32 %v1422, 0.0
        %v1431 = vmax.f32 %v1423, 0.0
        %v1432 = vmax.f32 %v1424, 0.0
        %v1433 = vmax.f32 %v1425, 0.0
        %v1434 = vmax.f32 %v1426, 0.0
        %v1435 = vmax.f32 %v1427, 0.0
        %v1436 = vmax.f32 %v1428, 0.0
        %v1437 = vmax.f32 %v1429, 0.0
        %1438 = vst [vmem:[%s460] sm:$0xff] %v1430
        %1439 = vst [vmem:[%s460 + $0x8] sm:$0xff] %v1431
        %1440 = vst [vmem:[%s460 + $0x10] sm:$0xff] %v1432
        %1441 = vst [vmem:[%s460 + $0x18] sm:$0xff] %v1433
        %1442 = vst [vmem:[%s460 + $0x20] sm:$0xff] %v1434
        %1443 = vst [vmem:[%s460 + $0x28] sm:$0xff] %v1435
        %1444 = vst [vmem:[%s460 + $0x30] sm:$0xff] %v1436
        %1445 = vst [vmem:[%s460 + $0x38] sm:$0xff] %v1437
        %s1446 = sand.u32 %s335, 1
        %s1447 = scalar_lea.sflag [#allocation5], %s1446
        %s1448 = sand.u32 %s335, 1
        %s1449 = smul.addr %s1448, 64
        %s1450 = scalar_lea.vmem [#allocation4], %s1449
        // Predicated region
        $region77: #{tpu_custom_call.1} parent=75 // pred_check
          %p1451 = pneg %p345
        $region78: #{tpu_custom_call.1} parent=75 // pred_check_branch
          %1453 = sbr.rel (%p1451) target = $region80
        $region79: #{tpu_custom_call.1} parent=75 // pred_region
          %s1455 = ssub.s32 1024, 1024
          %1456 = vsyncadd %s1447, %s1455
          %s1457 = smul.addr %s28, 8
          %s1458 = smul.addr %s1457, 128
          %s1459 = scalar_lea.hbm %s14, %s1458
          %s1460 = sshll.u32 %s1450, 4
          %s1461 = int_to_ptr.vmem [resolvable:$true] %s1460
          %1466 = dma.vmem_to_hbm [thread:$0]  %s1461, 1024, %s1459, %s1447, 256, 256, 16
        $region80: #{tpu_custom_call.1} parent=75 // pred_fallthru
          _
      $region76: #{tpu_custom_call.1} parent=5 // pred_fallthru
        _
      %p1467 = scmp.le.s32.totalorder 2, %s23
      // Predicated region
      $region81: #{tpu_custom_call.1} parent=5 // pred_check
        %p1468 = pneg %p1467
      $region82: #{tpu_custom_call.1} parent=5 // pred_check_branch
        %1470 = sbr.rel (%p1468) target = $region84
      $region83: #{tpu_custom_call.1} parent=5 // pred_region
        %s1471 = ssub.s32 %s23, 2
        // Predicated region
        $region85: #{tpu_custom_call.1} parent=83 // pred_check
          %p1472 = pneg %p351
        $region86: #{tpu_custom_call.1} parent=83 // pred_check_branch
          %1474 = sbr.rel (%p1472) target = $region88
        $region87: #{tpu_custom_call.1} parent=83 // pred_region
          %s1475 = sand.u32 %s336, 1
          %s1476 = scalar_lea.sflag [#allocation5], %s1475
          %s1477 = sand.u32 %s336, 1
          %s1478 = smul.addr %s1477, 64
          %s1479 = scalar_lea.vmem [#allocation4], %s1478
          %1480 = dma.done %s1476, 1024
        $region88: #{tpu_custom_call.1} parent=83 // pred_fallthru
          _
      $region84: #{tpu_custom_call.1} parent=5 // pred_fallthru
        _
    $region6: #{tpu_custom_call.1} parent=1 // loop_footer
      %s27 = sadd.s32 1, %s23
    $region7: #{tpu_custom_call.1} parent=1 // loop_footer_branch
      %22 = sbr.rel target = $region3
    $region8: #{tpu_custom_call.1} parent=1 // loop_exit
      _
    %1481 = vsyncpa [#allocation5], 1
    %s1482 = scalar_lea.sflag [#allocation5], 1
    %1483 = vsyncpa %s1482, 1

</llo_original>
